<compile_context>
chip_gen: v7x
topology: tpu7x:2x2x1
jax: 0.10.0
libtpu: 0.0.40
codegen_flags: <defaults>
</compile_context>

<pallas_src>
import functools

import jax
import jax.numpy as jnp
from jax.experimental import pallas as pl
from jax.experimental.pallas import tpu as pltpu


def _round_up(x, m):
    return (x + m - 1) // m * m


def _generator_kernel(pts_ref, zb_ref, w1_ref, w2_ref, b2_ref, w3_ref, b3_ref,
                      out_ref, max_ref):
    # Lane-dense layout inside the kernel:
    #   pts (3, T), zb (H1, 1), w1 (H1, 3), w2 (H2, H1), b2 (H2, 1),
    #   w3 (H3, H2), b3 (H3, 1)  ->  out (H3, T), max (1, T).
    p = pts_ref[...]
    w1 = w1_ref[...]

    # Layer 1: K=3 contraction as three VPU multiply-adds (no MXU push/pop).
    # 30x scale and the per-batch z-term are already folded into w1/zb.
    h = (w1[:, 0:1] * p[0:1, :]
         + w1[:, 1:2] * p[1:2, :]
         + w1[:, 2:3] * p[2:3, :]
         + zb_ref[...])
    h = jnp.sin(h)                                                  # (H1, T)

    # Layers 2/3 on the MXU (weights pre-scaled by 30 and pre-transposed).
    h = jnp.sin(jnp.dot(w2_ref[...], h,
                        preferred_element_type=jnp.float32) + b2_ref[...])
    h = jnp.sin(jnp.dot(w3_ref[...], h,
                        preferred_element_type=jnp.float32) + b3_ref[...])

    out_ref[...] = h.astype(out_ref.dtype)                          # (H3, T)
    # torch.max(..., axis=2, keepdims=True).values -> reduce over features
    # (the sublane axis in this layout).
    max_ref[...] = jnp.max(h, axis=0, keepdims=True).astype(max_ref.dtype)


def _pick_tile(N, B0, tile_n):
    """Lane-axis tile: multiple of 128 (or the full dim when N <= 128)."""
    if N <= 128:
        return N, 1
    tile = max(128, (min(tile_n, N) // 128) * 128)
    n_tiles = (N + tile - 1) // tile
    # v7x has 2 TensorCores: keep >= 2 parallel grid steps when possible.
    if B0 * n_tiles < 2 and tile >= 256:
        tile //= 2
        n_tiles = (N + tile - 1) // tile
    return tile, n_tiles


def _vmem_bytes_estimate(tile, H1, H2, H3):
    pad8 = lambda v: _round_up(max(v, 1), 8)
    lane = lambda v: _round_up(max(v, 1), 128)
    # double-buffered streamed blocks: points, features out, max out
    streamed = 2 * 4 * tile * (pad8(3) + pad8(H3) + pad8(1))
    # resident (constant index_map) operands, double-buffered by default
    resident = 2 * 4 * (pad8(H1) * lane(3) + pad8(H1) * lane(1)
                        + pad8(H2) * lane(H1) + pad8(H2) * lane(1)
                        + pad8(H3) * lane(H2) + pad8(H3) * lane(1))
    # layer intermediates
    interm = 4 * tile * (pad8(H1) + pad8(H2) + pad8(H3))
    return streamed + resident + interm


@functools.partial(jax.jit, static_argnames=("tile_n",))
def generator_forward(points, z, w1, b1, w2, b2, w3, b3, *, tile_n=4096):
    """points: (B0, N, 3), z: (B0, 1, z_dim).

    Returns (features (B0, N, gf_split), max (B0, N, 1)) — the values of the
    PyTorch module's forward.
    """
    B0, N, _ = points.shape
    H1, H2, H3 = w1.shape[1], w2.shape[1], w3.shape[1]
    f32 = jnp.float32

    # Split layer 1 ([points, z] @ W1 + b1 == points @ W1[:3] + (z @ W1[3:] + b1))
    # and fold the Sine 30x scale into all weights/biases.  Everything is
    # transposed so the kernel's fast axis is the point/row axis.
    w1T = (30.0 * w1[:3].astype(f32)).T                              # (H1, 3)
    zb = 30.0 * (z[:, 0, :].astype(f32) @ w1[3:].astype(f32)
                 + b1.astype(f32).reshape(-1))
    zbT = zb.reshape(B0, H1, 1)                                      # (B0, H1, 1)
    w2T = (30.0 * w2.astype(f32)).T                                  # (H2, H1)
    b2T = (30.0 * b2.astype(f32)).reshape(H2, 1)
    w3T = (30.0 * w3.astype(f32)).T                                  # (H3, H2)
    b3T = (30.0 * b3.astype(f32)).reshape(H3, 1)

    # Lane-dense layout: rows/points along the 128-lane axis.
    ptsT = jnp.transpose(points.astype(f32), (0, 2, 1))              # (B0, 3, N)

    tile, n_tiles = _pick_tile(N, B0, tile_n)
    vmem_limit = min(48 * 1024 * 1024,
                     max(32 * 1024 * 1024,
                         2 * _vmem_bytes_estimate(tile, H1, H2, H3)))

    out_t, max_t = pl.pallas_call(
        _generator_kernel,
        out_shape=(jax.ShapeDtypeStruct((B0, H3, N), f32),
                   jax.ShapeDtypeStruct((B0, 1, N), f32)),
        grid_spec=pltpu.PrefetchScalarGridSpec(
            num_scalar_prefetch=0,
            grid=(B0, n_tiles),
            in_specs=[
                pl.BlockSpec((None, 3, tile), lambda b, i: (b, 0, i)),   # points^T
                pl.BlockSpec((None, H1, 1), lambda b, i: (b, 0, 0)),     # zb per batch
                pl.BlockSpec((H1, 3), lambda b, i: (0, 0)),              # 30*W1[:3]^T
                pl.BlockSpec((H2, H1), lambda b, i: (0, 0)),             # 30*W2^T
                pl.BlockSpec((H2, 1), lambda b, i: (0, 0)),              # 30*b2^T
                pl.BlockSpec((H3, H2), lambda b, i: (0, 0)),             # 30*W3^T
                pl.BlockSpec((H3, 1), lambda b, i: (0, 0)),              # 30*b3^T
            ],
            out_specs=[
                pl.BlockSpec((None, H3, tile), lambda b, i: (b, 0, i)),  # features^T
                pl.BlockSpec((None, 1, tile), lambda b, i: (b, 0, i)),   # max^T
            ],
        ),
        compiler_params=pltpu.CompilerParams(
            dimension_semantics=("parallel", "parallel"),
            vmem_limit_bytes=vmem_limit,
        ),
    )(ptsT, zbT, w1T, w2T, b2T, w3T, b3T)

    # Present the module's caller-facing layout.
    return jnp.transpose(out_t, (0, 2, 1)), jnp.transpose(max_t, (0, 2, 1))


def make_params(key, z_dim, gf_dim, gf_split):
    """Parameter init mirroring the module's shapes.

    h1: Linear(z_dim+3, gf_dim*4)  -- first_layer_sine_init: U(-1/n, 1/n)
    h2: Linear(gf_dim*4, gf_dim)   -- sine_init
    h3: Linear(gf_dim, gf_split)   -- reference uses zeros; we use sine_init
                                      so the kernel output check is non-trivial.
    Weights are stored as (in_features, out_features).
    """
    d_in = z_dim + 3
    h1_out = gf_dim * 4
    k = jax.random.split(key, 6)

    w1 = jax.random.uniform(k[0], (d_in, h1_out), jnp.float32,
                            minval=-1.0 / d_in, maxval=1.0 / d_in)
    b1 = jax.random.uniform(k[1], (1, h1_out), jnp.float32,
                            minval=-1.0 / d_in, maxval=1.0 / d_in)

    s2 = (6.0 / h1_out) ** 0.5 / 30.0
    w2 = jax.random.uniform(k[2], (h1_out, gf_dim), jnp.float32,
                            minval=-s2, maxval=s2)
    b2 = jax.random.uniform(k[3], (1, gf_dim), jnp.float32,
                            minval=-s2, maxval=s2)

    s3 = (6.0 / gf_dim) ** 0.5 / 30.0
    w3 = jax.random.uniform(k[4], (gf_dim, gf_split), jnp.float32,
                            minval=-s3, maxval=s3)
    b3 = jax.random.uniform(k[5], (1, gf_split), jnp.float32,
                            minval=-s3, maxval=s3)
    return w1, b1, w2, b2, w3, b3


def reference_forward(points, z, w1, b1, w2, b2, w3, b3):
    """Pure-JAX reference replicating the PyTorch forward (concat path)."""
    N = points.shape[1]
    z_rep = jnp.repeat(z, N, axis=1)
    x = jnp.concatenate([points, z_rep], axis=2)
    h = jnp.sin(30.0 * (x @ w1 + b1[0]))
    h = jnp.sin(30.0 * (h @ w2 + b2[0]))
    h = jnp.sin(30.0 * (h @ w3 + b3[0]))
    return h, jnp.max(h, axis=2, keepdims=True)


if __name__ == "__main__":
    # Small shapes consistent with the module's forward signature.
    # N=200 is not a multiple of 128, exercising the cdiv boundary block
    # (no wrapper pad / slice copies anywhere).
    B0, N = 2, 200
    z_dim, gf_dim, gf_split = 32, 16, 8

    key = jax.random.PRNGKey(0)
    kp, kz, kw = jax.random.split(key, 3)
    points = jax.random.normal(kp, (B0, N, 3), jnp.float32)
    z = jax.random.normal(kz, (B0, 1, z_dim), jnp.float32)

    params = make_params(kw, z_dim, gf_dim, gf_split)

    pts_out, mx_out = generator_forward(points, z, *params)
    pts_out = jax.block_until_ready(pts_out)
    mx_out = jax.block_until_ready(mx_out)

    # Sanity check against the pure-JAX reference.
    ref_pts, ref_mx = reference_forward(points, z, *params)
    assert pts_out.shape == (B0, N, gf_split) and mx_out.shape == (B0, N, 1)
    assert jnp.allclose(pts_out, ref_pts, atol=5e-4, rtol=5e-4)
    assert jnp.allclose(mx_out, ref_mx, atol=5e-4, rtol=5e-4)

    print("KERNEL_OK")
</pallas_src>

<mosaic_0001>
module attributes {stable_mosaic.version = 11 : i64} {
  func.func @_generator_kernel(%arg0: i32, %arg1: i32, %arg2: memref<1x3x128xf32, #tpu.memory_space<vmem>>, %arg3: memref<1x64x1xf32, #tpu.memory_space<vmem>>, %arg4: memref<64x3xf32, #tpu.memory_space<vmem>>, %arg5: memref<16x64xf32, #tpu.memory_space<vmem>>, %arg6: memref<16x1xf32, #tpu.memory_space<vmem>>, %arg7: memref<8x16xf32, #tpu.memory_space<vmem>>, %arg8: memref<8x1xf32, #tpu.memory_space<vmem>>, %arg9: memref<1x8x128xf32, #tpu.memory_space<vmem>>, %arg10: memref<1x1x128xf32, #tpu.memory_space<vmem>>) attributes {dimension_semantics = [#tpu.dimension_semantics<parallel>, #tpu.dimension_semantics<parallel>], iteration_bounds = array<i64: 2, 2>, scalar_prefetch = 0 : i64, scratch_operands = 0 : i64, tpu.core_type = #tpu.core_type<tc>, window_params = [{transform_indices = @transform_0, window_bounds = array<i64: 1, 3, 128>}, {transform_indices = @transform_1, window_bounds = array<i64: 1, 64, 1>}, {pipeline_mode = #tpu.pipeline_mode<synchronous>, transform_indices = @transform_2, window_bounds = array<i64: 64, 3>}, {pipeline_mode = #tpu.pipeline_mode<synchronous>, transform_indices = @transform_3, window_bounds = array<i64: 16, 64>}, {pipeline_mode = #tpu.pipeline_mode<synchronous>, transform_indices = @transform_4, window_bounds = array<i64: 16, 1>}, {pipeline_mode = #tpu.pipeline_mode<synchronous>, transform_indices = @transform_5, window_bounds = array<i64: 8, 16>}, {pipeline_mode = #tpu.pipeline_mode<synchronous>, transform_indices = @transform_6, window_bounds = array<i64: 8, 1>}, {transform_indices = @transform_7, window_bounds = array<i64: 1, 8, 128>}, {transform_indices = @transform_8, window_bounds = array<i64: 1, 1, 128>}]} {
    %c0 = arith.constant 0 : index
    %c0_0 = arith.constant 0 : index
    %c0_1 = arith.constant 0 : index
    %0 = vector.load %arg2[%c0, %c0_0, %c0_1] : memref<1x3x128xf32, #tpu.memory_space<vmem>>, vector<1x3x128xf32>
    %1 = vector.shape_cast %0 : vector<1x3x128xf32> to vector<3x128xf32>
    %c0_2 = arith.constant 0 : index
    %c0_3 = arith.constant 0 : index
    %2 = vector.load %arg4[%c0_2, %c0_3] : memref<64x3xf32, #tpu.memory_space<vmem>>, vector<64x3xf32>
    %3 = vector.extract_strided_slice %2 {offsets = [0, 0], sizes = [64, 1], strides = [1, 1]} : vector<64x3xf32> to vector<64x1xf32>
    %4 = vector.extract_strided_slice %1 {offsets = [0, 0], sizes = [1, 128], strides = [1, 1]} : vector<3x128xf32> to vector<1x128xf32>
    %5 = vector.broadcast %3 : vector<64x1xf32> to vector<64x128xf32>
    %6 = vector.broadcast %4 : vector<1x128xf32> to vector<64x128xf32>
    %7 = arith.mulf %5, %6 : vector<64x128xf32>
    %8 = vector.extract_strided_slice %2 {offsets = [0, 1], sizes = [64, 1], strides = [1, 1]} : vector<64x3xf32> to vector<64x1xf32>
    %9 = vector.extract_strided_slice %1 {offsets = [1, 0], sizes = [1, 128], strides = [1, 1]} : vector<3x128xf32> to vector<1x128xf32>
    %10 = vector.broadcast %8 : vector<64x1xf32> to vector<64x128xf32>
    %11 = vector.broadcast %9 : vector<1x128xf32> to vector<64x128xf32>
    %12 = arith.mulf %10, %11 : vector<64x128xf32>
    %13 = arith.addf %7, %12 : vector<64x128xf32>
    %14 = vector.extract_strided_slice %2 {offsets = [0, 2], sizes = [64, 1], strides = [1, 1]} : vector<64x3xf32> to vector<64x1xf32>
    %15 = vector.extract_strided_slice %1 {offsets = [2, 0], sizes = [1, 128], strides = [1, 1]} : vector<3x128xf32> to vector<1x128xf32>
    %16 = vector.broadcast %14 : vector<64x1xf32> to vector<64x128xf32>
    %17 = vector.broadcast %15 : vector<1x128xf32> to vector<64x128xf32>
    %18 = arith.mulf %16, %17 : vector<64x128xf32>
    %19 = arith.addf %13, %18 : vector<64x128xf32>
    %c0_4 = arith.constant 0 : index
    %c0_5 = arith.constant 0 : index
    %c0_6 = arith.constant 0 : index
    %20 = vector.load %arg3[%c0_4, %c0_5, %c0_6] : memref<1x64x1xf32, #tpu.memory_space<vmem>>, vector<1x64x1xf32>
    %21 = vector.shape_cast %20 : vector<1x64x1xf32> to vector<64x1xf32>
    %22 = vector.broadcast %21 : vector<64x1xf32> to vector<64x128xf32>
    %23 = arith.addf %19, %22 : vector<64x128xf32>
    %24 = math.sin %23 : vector<64x128xf32>
    %c0_7 = arith.constant 0 : index
    %c0_8 = arith.constant 0 : index
    %25 = vector.load %arg5[%c0_7, %c0_8] : memref<16x64xf32, #tpu.memory_space<vmem>>, vector<16x64xf32>
    %cst = arith.constant dense<0.000000e+00> : vector<16x128xf32>
    %26 = tpu.matmul %25, %24, %cst {dimension_numbers = #tpu.dot_dimension_numbers<[1], [0], [0], [1], [0, 0, 1, 1], [], []>} : vector<16x64xf32>, vector<64x128xf32>, vector<16x128xf32> -> vector<16x128xf32>
    %c0_9 = arith.constant 0 : index
    %c0_10 = arith.constant 0 : index
    %27 = vector.load %arg6[%c0_9, %c0_10] : memref<16x1xf32, #tpu.memory_space<vmem>>, vector<16x1xf32>
    %28 = vector.broadcast %27 : vector<16x1xf32> to vector<16x128xf32>
    %29 = arith.addf %26, %28 : vector<16x128xf32>
    %30 = math.sin %29 : vector<16x128xf32>
    %c0_11 = arith.constant 0 : index
    %c0_12 = arith.constant 0 : index
    %31 = vector.load %arg7[%c0_11, %c0_12] : memref<8x16xf32, #tpu.memory_space<vmem>>, vector<8x16xf32>
    %cst_13 = arith.constant dense<0.000000e+00> : vector<8x128xf32>
    %32 = tpu.matmul %31, %30, %cst_13 {dimension_numbers = #tpu.dot_dimension_numbers<[1], [0], [0], [1], [0, 0, 1, 1], [], []>} : vector<8x16xf32>, vector<16x128xf32>, vector<8x128xf32> -> vector<8x128xf32>
    %c0_14 = arith.constant 0 : index
    %c0_15 = arith.constant 0 : index
    %33 = vector.load %arg8[%c0_14, %c0_15] : memref<8x1xf32, #tpu.memory_space<vmem>>, vector<8x1xf32>
    %34 = vector.broadcast %33 : vector<8x1xf32> to vector<8x128xf32>
    %35 = arith.addf %32, %34 : vector<8x128xf32>
    %36 = math.sin %35 : vector<8x128xf32>
    %c0_16 = arith.constant 0 : index
    %c0_17 = arith.constant 0 : index
    %c0_18 = arith.constant 0 : index
    %37 = vector.load %arg9[%c0_16, %c0_17, %c0_18] : memref<1x8x128xf32, #tpu.memory_space<vmem>>, vector<1x8x128xf32>
    %38 = vector.shape_cast %37 : vector<1x8x128xf32> to vector<8x128xf32>
    %39 = vector.shape_cast %36 : vector<8x128xf32> to vector<1x8x128xf32>
    tpu.vector_store %arg9[%c0_16, %c0_17, %c0_18], %39 {strides = array<i32>} : memref<1x8x128xf32, #tpu.memory_space<vmem>>, vector<1x8x128xf32>,
    %cst_19 = arith.constant dense<0xFF800000> : vector<128xf32>
    %40 = vector.multi_reduction <maximumf>, %36, %cst_19 [0] : vector<8x128xf32> to vector<128xf32>
    %41 = vector.shape_cast %40 : vector<128xf32> to vector<1x128xf32>
    %c0_20 = arith.constant 0 : index
    %c0_21 = arith.constant 0 : index
    %c0_22 = arith.constant 0 : index
    %42 = vector.load %arg10[%c0_20, %c0_21, %c0_22] : memref<1x1x128xf32, #tpu.memory_space<vmem>>, vector<1x1x128xf32>
    %43 = vector.shape_cast %42 : vector<1x1x128xf32> to vector<1x128xf32>
    %44 = vector.shape_cast %41 : vector<1x128xf32> to vector<1x1x128xf32>
    tpu.vector_store %arg10[%c0_20, %c0_21, %c0_22], %44 {strides = array<i32>} : memref<1x1x128xf32, #tpu.memory_space<vmem>>, vector<1x1x128xf32>,
    return
  }
  func.func @transform_0(%arg0: i32, %arg1: i32) -> (i32, i32, i32) {
    %c0_i32 = arith.constant 0 : i32
    %c0_i32_0 = arith.constant 0 : i32
    return %arg0, %c0_i32, %arg1 : i32, i32, i32
  }
  func.func @transform_1(%arg0: i32, %arg1: i32) -> (i32, i32, i32) {
    %c0_i32 = arith.constant 0 : i32
    %c0_i32_0 = arith.constant 0 : i32
    %c0_i32_1 = arith.constant 0 : i32
    return %arg0, %c0_i32, %c0_i32_0 : i32, i32, i32
  }
  func.func @transform_2(%arg0: i32, %arg1: i32) -> (i32, i32) {
    %c0_i32 = arith.constant 0 : i32
    %c0_i32_0 = arith.constant 0 : i32
    %c0_i32_1 = arith.constant 0 : i32
    return %c0_i32, %c0_i32_0 : i32, i32
  }
  func.func @transform_3(%arg0: i32, %arg1: i32) -> (i32, i32) {
    %c0_i32 = arith.constant 0 : i32
    %c0_i32_0 = arith.constant 0 : i32
    %c0_i32_1 = arith.constant 0 : i32
    return %c0_i32, %c0_i32_0 : i32, i32
  }
  func.func @transform_4(%arg0: i32, %arg1: i32) -> (i32, i32) {
    %c0_i32 = arith.constant 0 : i32
    %c0_i32_0 = arith.constant 0 : i32
    %c0_i32_1 = arith.constant 0 : i32
    return %c0_i32, %c0_i32_0 : i32, i32
  }
  func.func @transform_5(%arg0: i32, %arg1: i32) -> (i32, i32) {
    %c0_i32 = arith.constant 0 : i32
    %c0_i32_0 = arith.constant 0 : i32
    %c0_i32_1 = arith.constant 0 : i32
    return %c0_i32, %c0_i32_0 : i32, i32
  }
  func.func @transform_6(%arg0: i32, %arg1: i32) -> (i32, i32) {
    %c0_i32 = arith.constant 0 : i32
    %c0_i32_0 = arith.constant 0 : i32
    %c0_i32_1 = arith.constant 0 : i32
    return %c0_i32, %c0_i32_0 : i32, i32
  }
  func.func @transform_7(%arg0: i32, %arg1: i32) -> (i32, i32, i32) {
    %c0_i32 = arith.constant 0 : i32
    %c0_i32_0 = arith.constant 0 : i32
    return %arg0, %c0_i32, %arg1 : i32, i32, i32
  }
  func.func @transform_8(%arg0: i32, %arg1: i32) -> (i32, i32, i32) {
    %c0_i32 = arith.constant 0 : i32
    %c0_i32_0 = arith.constant 0 : i32
    return %arg0, %c0_i32, %arg1 : i32, i32, i32
  }
}

</mosaic_0001>

<llo_original>
// kernel: generator_forward.1
$region0: #{generator_forward.1}
  #allocation0 [shape = 'u32[]', space=smem, size = 0x4, offset = 0x4, fixed_abs, tag = 'smem constant byte address 0x4 - core index']
  #allocation1 [shape = 'u32[144,128]{1,0:T(1,128)}', space=vmem, size = 0x12000, scoped, tag = 'internal scratch']
  %s0 = inlined_call_operand.vmem [shape: f32[2,3,200], index: 0, kind: input, shape index: {}]
  %s1 = inlined_call_operand.vmem [shape: f32[2,64,1], index: 1, kind: input, shape index: {}]
  %s2 = inlined_call_operand.vmem [shape: f32[64,3], index: 2, kind: input, shape index: {}]
  %s3 = inlined_call_operand.vmem [shape: f32[16,64], index: 3, kind: input, shape index: {}]
  %s4 = inlined_call_operand.vmem [shape: f32[16,1], index: 4, kind: input, shape index: {}]
  %s5 = inlined_call_operand.vmem [shape: f32[8,16], index: 5, kind: input, shape index: {}]
  %s6 = inlined_call_operand.vmem [shape: f32[8,1], index: 6, kind: input, shape index: {}]
  %s7 = inlined_call_operand.hbm [shape: f32[2,8,200], index: 7, kind: output, shape index: {0}]
  %s8 = inlined_call_operand.hbm [shape: f32[2,1,200], index: 8, kind: output, shape index: {1}]
  %9 = xla_tuple %s7, %s8
  %s10 = sld [smem:[#allocation0]]
  $region69: #{generator_forward.1} parent=0
    _
  %s12 = ssub.s32 1, %s10
  %s13 = scalar_select 0, %s12, %s10
  $region1: #{generator_forward.1} parent=0
    #allocation2 [shape = 'u8[8192]{0}', space=vmem, size = 0x2000, scoped, tag = 'output window, operand 0']
    #allocation3 [shape = 's32[2]{0}', space=sflag, size = 0x8, scoped, tag = 'scoped memory for generator_forward.1']
    #allocation4 [shape = 'u8[1024]{0}', space=vmem, size = 0x400, scoped, tag = 'output window, operand 1']
    #allocation5 [shape = 's32[2]{0}', space=sflag, size = 0x8, scoped, tag = 'scoped memory for generator_forward.1']
    %14 = vsyncpa [#allocation3], 0
    %s15 = scalar_lea.sflag [#allocation3], 1
    %16 = vsyncpa %s15, 0
    %17 = vsyncpa [#allocation5], 0
    %s18 = scalar_lea.sflag [#allocation5], 1
    %19 = vsyncpa %s18, 0
    loop: start=0, step=1, limit=6
    $region2: #{generator_forward.1} parent=1 // loop_pre_header
      _
    $region3: #{generator_forward.1} parent=1 // loop_header
      %s21 = sphi 0, %s25
      %p22 = scmp.ge.s32.totalorder %s21, 6
      %s28 = sphi 0, %s40
      %s29 = sphi 0, %s36
      %s30 = sphi 0, %s28
      %s31 = sphi 0, %s29
      %s32 = sphi 0, %s30
      %s33 = sphi 0, %s31
      %s45 = sphi 0, %s47
      %s48 = sphi 0, %s45
      %s49 = sphi 0, %s48
      %s65 = sphi 0, %s49
      %s71 = sphi 0, %s73
      %s74 = sphi 0, %s71
      %s75 = sphi 0, %s74
      %s91 = sphi 0, %s75
      %s95 = sphi 0, %s95
      %s97 = sphi 0, %s95
      %s98 = sphi 0, %s97
      %s112 = sphi 0, %s98
      %s116 = sphi 0, %s116
      %s118 = sphi 0, %s116
      %s119 = sphi 0, %s118
      %s133 = sphi 0, %s119
      %s137 = sphi 0, %s137
      %s139 = sphi 0, %s137
      %s140 = sphi 0, %s139
      %s154 = sphi 0, %s140
      %s158 = sphi 0, %s158
      %s160 = sphi 0, %s158
      %s161 = sphi 0, %s160
      %s175 = sphi 0, %s161
      %s179 = sphi 0, %s179
      %s181 = sphi 0, %s179
      %s182 = sphi 0, %s181
      %s196 = sphi 0, %s182
      %s204 = sphi 0, %s206
      %s207 = sphi 0, %s204
      %s208 = sphi 0, %s207
      %s224 = sphi 0, %s208
      %s232 = sphi 0, %s234
      %s235 = sphi 0, %s232
      %s236 = sphi 0, %s235
      %s252 = sphi 0, %s236
    $region4: #{generator_forward.1} parent=1 // loop_header_branch
      %24 = sbr.rel (%p22) target = $region8
    $region5: #{generator_forward.1} parent=1 // loop_body
      %s26 = ssub.s32 %s21, 1
      %s27 = ssub.s32 %s21, 2
      %s34 = sadd.s32 1, %s29
      %p35 = scmp.ge.s32.totalorder %s34, 2
      %s36 = scalar_select %p35, 0, %s34
      %s37 = sadd.s32 1, %s28
      %s38 = scalar_select %p35, %s37, %s28
      %p39 = scmp.ge.s32.totalorder %s38, 2
      %s40 = scalar_select %p39, 0, %s38
      %s41 = ssub.s32 %s28, %s40
      %s42 = ssub.s32 %s29, %s36
      %s43 = sor.u32 %s41, %s42
      %p44 = scmp.eq.s32.totalorder %s43, 0
      %s46 = sadd.s32 %s45, 1
      %s47 = scalar_select %p44, %s45, %s46
      %p50 = pneg %p44
      %p51 = scmp.eq.s32.totalorder %s21, 3
      %p52 = por %p50, %p51
      %p53 = scmp.ne.s32.totalorder %s45, %s48
      %p54 = scmp.eq.s32.totalorder %s21, 0
      %p55 = por %p53, %p54
      %p56 = scmp.ne.s32.totalorder %s45, %s48
      %p57 = scmp.eq.s32.totalorder %s26, 3
      %p58 = por %p56, %p57
      %p59 = scmp.ne.s32.totalorder %s48, %s49
      %p60 = scmp.eq.s32.totalorder %s26, 0
      %p61 = por %p59, %p60
      %p62 = scmp.ne.s32.totalorder %s48, %s49
      %p63 = scmp.eq.s32.totalorder %s27, 3
      %p64 = por %p62, %p63
      %p66 = scmp.ne.s32.totalorder %s49, %s65
      %p67 = scmp.eq.s32.totalorder %s27, 0
      %p68 = por %p66, %p67
      %s69 = ssub.s32 %s28, %s40
      %p70 = scmp.eq.s32.totalorder %s69, 0
      %s72 = sadd.s32 %s71, 1
      %s73 = scalar_select %p70, %s71, %s72
      %p76 = pneg %p70
      %p77 = scmp.eq.s32.totalorder %s21, 3
      %p78 = por %p76, %p77
      %p79 = scmp.ne.s32.totalorder %s71, %s74
      %p80 = scmp.eq.s32.totalorder %s21, 0
      %p81 = por %p79, %p80
      %p82 = scmp.ne.s32.totalorder %s71, %s74
      %p83 = scmp.eq.s32.totalorder %s26, 3
      %p84 = por %p82, %p83
      %p85 = scmp.ne.s32.totalorder %s74, %s75
      %p86 = scmp.eq.s32.totalorder %s26, 0
      %p87 = por %p85, %p86
      %p88 = scmp.ne.s32.totalorder %s74, %s75
      %p89 = scmp.eq.s32.totalorder %s27, 3
      %p90 = por %p88, %p89
      %p92 = scmp.ne.s32.totalorder %s75, %s91
      %p93 = scmp.eq.s32.totalorder %s27, 0
      %p94 = por %p92, %p93
      %s96 = sadd.s32 %s95, 1
      %p99 = scmp.eq.s32.totalorder %s21, 3
      %p100 = scmp.ne.s32.totalorder %s95, %s97
      %p101 = scmp.eq.s32.totalorder %s21, 0
      %p102 = por %p100, %p101
      %p103 = scmp.ne.s32.totalorder %s95, %s97
      %p104 = scmp.eq.s32.totalorder %s26, 3
      %p105 = por %p103, %p104
      %p106 = scmp.ne.s32.totalorder %s97, %s98
      %p107 = scmp.eq.s32.totalorder %s26, 0
      %p108 = por %p106, %p107
      %p109 = scmp.ne.s32.totalorder %s97, %s98
      %p110 = scmp.eq.s32.totalorder %s27, 3
      %p111 = por %p109, %p110
      %p113 = scmp.ne.s32.totalorder %s98, %s112
      %p114 = scmp.eq.s32.totalorder %s27, 0
      %p115 = por %p113, %p114
      %s117 = sadd.s32 %s116, 1
      %p120 = scmp.eq.s32.totalorder %s21, 3
      %p121 = scmp.ne.s32.totalorder %s116, %s118
      %p122 = scmp.eq.s32.totalorder %s21, 0
      %p123 = por %p121, %p122
      %p124 = scmp.ne.s32.totalorder %s116, %s118
      %p125 = scmp.eq.s32.totalorder %s26, 3
      %p126 = por %p124, %p125
      %p127 = scmp.ne.s32.totalorder %s118, %s119
      %p128 = scmp.eq.s32.totalorder %s26, 0
      %p129 = por %p127, %p128
      %p130 = scmp.ne.s32.totalorder %s118, %s119
      %p131 = scmp.eq.s32.totalorder %s27, 3
      %p132 = por %p130, %p131
      %p134 = scmp.ne.s32.totalorder %s119, %s133
      %p135 = scmp.eq.s32.totalorder %s27, 0
      %p136 = por %p134, %p135
      %s138 = sadd.s32 %s137, 1
      %p141 = scmp.eq.s32.totalorder %s21, 3
      %p142 = scmp.ne.s32.totalorder %s137, %s139
      %p143 = scmp.eq.s32.totalorder %s21, 0
      %p144 = por %p142, %p143
      %p145 = scmp.ne.s32.totalorder %s137, %s139
      %p146 = scmp.eq.s32.totalorder %s26, 3
      %p147 = por %p145, %p146
      %p148 = scmp.ne.s32.totalorder %s139, %s140
      %p149 = scmp.eq.s32.totalorder %s26, 0
      %p150 = por %p148, %p149
      %p151 = scmp.ne.s32.totalorder %s139, %s140
      %p152 = scmp.eq.s32.totalorder %s27, 3
      %p153 = por %p151, %p152
      %p155 = scmp.ne.s32.totalorder %s140, %s154
      %p156 = scmp.eq.s32.totalorder %s27, 0
      %p157 = por %p155, %p156
      %s159 = sadd.s32 %s158, 1
      %p162 = scmp.eq.s32.totalorder %s21, 3
      %p163 = scmp.ne.s32.totalorder %s158, %s160
      %p164 = scmp.eq.s32.totalorder %s21, 0
      %p165 = por %p163, %p164
      %p166 = scmp.ne.s32.totalorder %s158, %s160
      %p167 = scmp.eq.s32.totalorder %s26, 3
      %p168 = por %p166, %p167
      %p169 = scmp.ne.s32.totalorder %s160, %s161
      %p170 = scmp.eq.s32.totalorder %s26, 0
      %p171 = por %p169, %p170
      %p172 = scmp.ne.s32.totalorder %s160, %s161
      %p173 = scmp.eq.s32.totalorder %s27, 3
      %p174 = por %p172, %p173
      %p176 = scmp.ne.s32.totalorder %s161, %s175
      %p177 = scmp.eq.s32.totalorder %s27, 0
      %p178 = por %p176, %p177
      %s180 = sadd.s32 %s179, 1
      %p183 = scmp.eq.s32.totalorder %s21, 3
      %p184 = scmp.ne.s32.totalorder %s179, %s181
      %p185 = scmp.eq.s32.totalorder %s21, 0
      %p186 = por %p184, %p185
      %p187 = scmp.ne.s32.totalorder %s179, %s181
      %p188 = scmp.eq.s32.totalorder %s26, 3
      %p189 = por %p187, %p188
      %p190 = scmp.ne.s32.totalorder %s181, %s182
      %p191 = scmp.eq.s32.totalorder %s26, 0
      %p192 = por %p190, %p191
      %p193 = scmp.ne.s32.totalorder %s181, %s182
      %p194 = scmp.eq.s32.totalorder %s27, 3
      %p195 = por %p193, %p194
      %p197 = scmp.ne.s32.totalorder %s182, %s196
      %p198 = scmp.eq.s32.totalorder %s27, 0
      %p199 = por %p197, %p198
      %s200 = ssub.s32 %s28, %s40
      %s201 = ssub.s32 %s29, %s36
      %s202 = sor.u32 %s200, %s201
      %p203 = scmp.eq.s32.totalorder %s202, 0
      %s205 = sadd.s32 %s204, 1
      %s206 = scalar_select %p203, %s204, %s205
      %p209 = pneg %p203
      %p210 = scmp.eq.s32.totalorder %s21, 3
      %p211 = por %p209, %p210
      %p212 = scmp.ne.s32.totalorder %s204, %s207
      %p213 = scmp.eq.s32.totalorder %s21, 0
      %p214 = por %p212, %p213
      %p215 = scmp.ne.s32.totalorder %s204, %s207
      %p216 = scmp.eq.s32.totalorder %s26, 3
      %p217 = por %p215, %p216
      %p218 = scmp.ne.s32.totalorder %s207, %s208
      %p219 = scmp.eq.s32.totalorder %s26, 0
      %p220 = por %p218, %p219
      %p221 = scmp.ne.s32.totalorder %s207, %s208
      %p222 = scmp.eq.s32.totalorder %s27, 3
      %p223 = por %p221, %p222
      %p225 = scmp.ne.s32.totalorder %s208, %s224
      %p226 = scmp.eq.s32.totalorder %s27, 0
      %p227 = por %p225, %p226
      %s228 = ssub.s32 %s28, %s40
      %s229 = ssub.s32 %s29, %s36
      %s230 = sor.u32 %s228, %s229
      %p231 = scmp.eq.s32.totalorder %s230, 0
      %s233 = sadd.s32 %s232, 1
      %s234 = scalar_select %p231, %s232, %s233
      %p237 = pneg %p231
      %p238 = scmp.eq.s32.totalorder %s21, 3
      %p239 = por %p237, %p238
      %p240 = scmp.ne.s32.totalorder %s232, %s235
      %p241 = scmp.eq.s32.totalorder %s21, 0
      %p242 = por %p240, %p241
      %p243 = scmp.ne.s32.totalorder %s232, %s235
      %p244 = scmp.eq.s32.totalorder %s26, 3
      %p245 = por %p243, %p244
      %p246 = scmp.ne.s32.totalorder %s235, %s236
      %p247 = scmp.eq.s32.totalorder %s26, 0
      %p248 = por %p246, %p247
      %p249 = scmp.ne.s32.totalorder %s235, %s236
      %p250 = scmp.eq.s32.totalorder %s27, 3
      %p251 = por %p249, %p250
      %p253 = scmp.ne.s32.totalorder %s236, %s252
      %p254 = scmp.eq.s32.totalorder %s27, 0
      %p255 = por %p253, %p254
      %p256 = scmp.le.s32.totalorder 1, %s21
      %p257 = scmp.lt.s32.totalorder %s21, 5
      %p258 = pnand %p256, %p257
      %p259 = pneg %p258
      // Predicated region
      $region9: #{generator_forward.1} parent=5 // pred_check
        _
      $region10: #{generator_forward.1} parent=5 // pred_check_branch
        %261 = sbr.rel (%p258) target = $region12
      $region11: #{generator_forward.1} parent=5 // pred_region
        %s262 = ssub.s32 %s21, 1
        // Predicated region
        $region13: #{generator_forward.1} parent=11 // pred_check
          %p263 = pneg %p108
        $region14: #{generator_forward.1} parent=11 // pred_check_branch
          %265 = sbr.rel (%p263) target = $region16
        $region15: #{generator_forward.1} parent=11 // pred_region
          _
        $region16: #{generator_forward.1} parent=11 // pred_fallthru
          _
        // Predicated region
        $region17: #{generator_forward.1} parent=11 // pred_check
          %p266 = pneg %p129
        $region18: #{generator_forward.1} parent=11 // pred_check_branch
          %268 = sbr.rel (%p266) target = $region20
        $region19: #{generator_forward.1} parent=11 // pred_region
          _
        $region20: #{generator_forward.1} parent=11 // pred_fallthru
          _
        // Predicated region
        $region21: #{generator_forward.1} parent=11 // pred_check
          %p269 = pneg %p150
        $region22: #{generator_forward.1} parent=11 // pred_check_branch
          %271 = sbr.rel (%p269) target = $region24
        $region23: #{generator_forward.1} parent=11 // pred_region
          _
        $region24: #{generator_forward.1} parent=11 // pred_fallthru
          _
        // Predicated region
        $region25: #{generator_forward.1} parent=11 // pred_check
          %p272 = pneg %p171
        $region26: #{generator_forward.1} parent=11 // pred_check_branch
          %274 = sbr.rel (%p272) target = $region28
        $region27: #{generator_forward.1} parent=11 // pred_region
          _
        $region28: #{generator_forward.1} parent=11 // pred_fallthru
          _
        // Predicated region
        $region29: #{generator_forward.1} parent=11 // pred_check
          %p275 = pneg %p192
        $region30: #{generator_forward.1} parent=11 // pred_check_branch
          %277 = sbr.rel (%p275) target = $region32
        $region31: #{generator_forward.1} parent=11 // pred_region
          _
        $region32: #{generator_forward.1} parent=11 // pred_fallthru
          _
      $region12: #{generator_forward.1} parent=5 // pred_fallthru
        _
      %p278 = scmp.lt.s32.totalorder %s21, 4
      // Predicated region
      $region33: #{generator_forward.1} parent=5 // pred_check
        %p279 = pneg %p278
      $region34: #{generator_forward.1} parent=5 // pred_check_branch
        %281 = sbr.rel (%p279) target = $region36
      $region35: #{generator_forward.1} parent=5 // pred_region
        // Predicated region
        $region37: #{generator_forward.1} parent=35 // pred_check
          %p282 = pneg %p55
        $region38: #{generator_forward.1} parent=35 // pred_check_branch
          %284 = sbr.rel (%p282) target = $region40
        $region39: #{generator_forward.1} parent=35 // pred_region
          %p285 = scmp.lt.s32.totalorder %s28, 1
          %s286 = scalar_select %p285, %s28, 1
          %p287 = scmp.lt.s32.totalorder %s29, 1
          %s288 = scalar_select %p287, %s29, 1
          %s289 = smul.addr %s286, 2
          %s290 = sadd.s32 %s288, %s289
          %s291 = smul.addr %s290, 4
          %s292 = scalar_lea.vmem %s0, %s291
        $region40: #{generator_forward.1} parent=35 // pred_fallthru
          _
        // Predicated region
        $region41: #{generator_forward.1} parent=35 // pred_check
          %p293 = pneg %p81
        $region42: #{generator_forward.1} parent=35 // pred_check_branch
          %295 = sbr.rel (%p293) target = $region44
        $region43: #{generator_forward.1} parent=35 // pred_region
          %p296 = scmp.lt.s32.totalorder %s28, 1
          %s297 = scalar_select %p296, %s28, 1
          %s298 = smul.addr %s297, 8
          %s299 = smul.addr %s298, 8
          %s300 = scalar_lea.vmem %s1, %s299
        $region44: #{generator_forward.1} parent=35 // pred_fallthru
          _
      $region36: #{generator_forward.1} parent=5 // pred_fallthru
        _
      %p301 = scmp.le.s32.totalorder 1, %s21
      %p302 = scmp.lt.s32.totalorder %s21, 5
      %p303 = pnand %p301, %p302
      %p304 = pneg %p303
      // Predicated region
      $region45: #{generator_forward.1} parent=5 // pred_check
        _
      $region46: #{generator_forward.1} parent=5 // pred_check_branch
        %306 = sbr.rel (%p303) target = $region48
      $region47: #{generator_forward.1} parent=5 // pred_region
        %s307 = ssub.s32 %s21, 1
        %p308 = scmp.lt.s32.totalorder %s30, 1
        %s309 = scalar_select %p308, %s30, 1
        %p310 = scmp.lt.s32.totalorder %s31, 1
        %s311 = scalar_select %p310, %s31, 1
        %s312 = smul.addr %s309, 2
        %s313 = sadd.s32 %s311, %s312
        %s314 = smul.addr %s313, 4
        %s315 = scalar_lea.vmem %s0, %s314
        %p316 = pneg %p61
        %p317 = pneg %p58
        %p318 = scmp.lt.s32.totalorder %s30, 1
        %s319 = scalar_select %p318, %s30, 1
        %s320 = smul.addr %s319, 8
        %s321 = smul.addr %s320, 8
        %s322 = scalar_lea.vmem %s1, %s321
        %p323 = pneg %p87
        %p324 = pneg %p84
        %p325 = pneg %p108
        %p326 = pneg %p105
        %p327 = pneg %p129
        %p328 = pneg %p126
        %p329 = pneg %p150
        %p330 = pneg %p147
        %p331 = pneg %p171
        %p332 = pneg %p168
        %p333 = pneg %p192
        %p334 = pneg %p189
        %p335 = pneg %p220
        %p336 = pneg %p217
        %s337 = sand.u32 %s207, 1
        %s338 = scalar_lea.sflag [#allocation3], %s337
        %s339 = sand.u32 %s207, 1
        %s340 = smul.addr %s339, 8
        %s341 = scalar_lea.vmem [#allocation2], %s340
        %p342 = pneg %p248
        %p343 = pneg %p245
        %s344 = sand.u32 %s235, 1
        %s345 = scalar_lea.sflag [#allocation5], %s344
        %s346 = sand.u32 %s235, 1
        %s347 = scalar_lea.vmem [#allocation4], %s346
        %p348 = scmp.lt.s32.totalorder %s30, 1
        %s349 = scalar_select %p348, %s30, 1
        %p350 = scmp.lt.s32.totalorder %s31, 1
        %s351 = scalar_select %p350, %s31, 1
        %s352 = smul.addr %s349, 2
        %s353 = sadd.s32 %s351, %s352
        %s354 = smul.addr %s353, 4
        %s355 = scalar_lea.vmem %s0, %s354
        %p356 = scmp.lt.s32.totalorder %s30, 1
        %s357 = scalar_select %p356, %s30, 1
        %s358 = smul.addr %s357, 8
        %s359 = smul.addr %s358, 8
        %s360 = scalar_lea.vmem %s1, %s359
        %v361 = vld [vmem:[%s355] sm:$0x7]
        %v362 = vld [vmem:[%s2] sm:$0xff]
        %v363 = vld [vmem:[%s2 + $0x8] sm:$0xff]
        %v364 = vld [vmem:[%s2 + $0x10] sm:$0xff]
        %v365 = vld [vmem:[%s2 + $0x18] sm:$0xff]
        %v366 = vld [vmem:[%s2 + $0x20] sm:$0xff]
        %v367 = vld [vmem:[%s2 + $0x28] sm:$0xff]
        %v368 = vld [vmem:[%s2 + $0x30] sm:$0xff]
        %v369 = vld [vmem:[%s2 + $0x38] sm:$0xff]
        %371 = vset.pattern.permute.xlu0 0
        %372 = vperm.xlu0 %371, %v362
        %v373 = vpop.permute.xlu0 %372
        %376 = vset.pattern.permute.xlu0 0
        %377 = vperm.xlu0 %376, %v363
        %v378 = vpop.permute.xlu0 %377
        %381 = vset.pattern.permute.xlu0 0
        %382 = vperm.xlu0 %381, %v364
        %v383 = vpop.permute.xlu0 %382
        %386 = vset.pattern.permute.xlu0 0
        %387 = vperm.xlu0 %386, %v365
        %v388 = vpop.permute.xlu0 %387
        %391 = vset.pattern.permute.xlu0 0
        %392 = vperm.xlu0 %391, %v366
        %v393 = vpop.permute.xlu0 %392
        %396 = vset.pattern.permute.xlu0 0
        %397 = vperm.xlu0 %396, %v367
        %v398 = vpop.permute.xlu0 %397
        %401 = vset.pattern.permute.xlu0 0
        %402 = vperm.xlu0 %401, %v368
        %v403 = vpop.permute.xlu0 %402
        %406 = vset.pattern.permute.xlu0 0
        %407 = vperm.xlu0 %406, %v369
        %v408 = vpop.permute.xlu0 %407
        %v410 = vlaneseq
        %v411 = vshrl.u32 %v410, 7
        %v412 = vsub.s32 0, %v411
        %v413 = vrot.slane %v361, %v412
        %v414 = vmul.f32 %v373, %v413
        %v415 = vmul.f32 %v378, %v413
        %v416 = vmul.f32 %v383, %v413
        %v417 = vmul.f32 %v388, %v413
        %v418 = vmul.f32 %v393, %v413
        %v419 = vmul.f32 %v398, %v413
        %v420 = vmul.f32 %v403, %v413
        %v421 = vmul.f32 %v408, %v413
        %422 = vset.pattern.permute.xlu0 1
        %423 = vperm.xlu0 %422, %v362
        %v424 = vpop.permute.xlu0 %423
        %426 = vset.pattern.permute.xlu0 1
        %427 = vperm.xlu0 %426, %v363
        %v428 = vpop.permute.xlu0 %427
        %430 = vset.pattern.permute.xlu0 1
        %431 = vperm.xlu0 %430, %v364
        %v432 = vpop.permute.xlu0 %431
        %434 = vset.pattern.permute.xlu0 1
        %435 = vperm.xlu0 %434, %v365
        %v436 = vpop.permute.xlu0 %435
        %438 = vset.pattern.permute.xlu0 1
        %439 = vperm.xlu0 %438, %v366
        %v440 = vpop.permute.xlu0 %439
        %442 = vset.pattern.permute.xlu0 1
        %443 = vperm.xlu0 %442, %v367
        %v444 = vpop.permute.xlu0 %443
        %446 = vset.pattern.permute.xlu0 1
        %447 = vperm.xlu0 %446, %v368
        %v448 = vpop.permute.xlu0 %447
        %450 = vset.pattern.permute.xlu0 1
        %451 = vperm.xlu0 %450, %v369
        %v452 = vpop.permute.xlu0 %451
        %v454 = vlaneseq
        %v455 = vshrl.u32 %v454, 7
        %v456 = vsub.s32 1, %v455
        %v457 = vrot.slane %v361, %v456
        %v458 = vmul.f32 %v424, %v457
        %v459 = vmul.f32 %v428, %v457
        %v460 = vmul.f32 %v432, %v457
        %v461 = vmul.f32 %v436, %v457
        %v462 = vmul.f32 %v440, %v457
        %v463 = vmul.f32 %v444, %v457
        %v464 = vmul.f32 %v448, %v457
        %v465 = vmul.f32 %v452, %v457
        %v466 = vadd.f32 %v414, %v458
        %v467 = vadd.f32 %v415, %v459
        %v468 = vadd.f32 %v416, %v460
        %v469 = vadd.f32 %v417, %v461
        %v470 = vadd.f32 %v418, %v462
        %v471 = vadd.f32 %v419, %v463
        %v472 = vadd.f32 %v420, %v464
        %v473 = vadd.f32 %v421, %v465
        %474 = vset.pattern.permute.xlu0 2
        %475 = vperm.xlu0 %474, %v362
        %v476 = vpop.permute.xlu0 %475
        %478 = vset.pattern.permute.xlu0 2
        %479 = vperm.xlu0 %478, %v363
        %v480 = vpop.permute.xlu0 %479
        %482 = vset.pattern.permute.xlu0 2
        %483 = vperm.xlu0 %482, %v364
        %v484 = vpop.permute.xlu0 %483
        %486 = vset.pattern.permute.xlu0 2
        %487 = vperm.xlu0 %486, %v365
        %v488 = vpop.permute.xlu0 %487
        %490 = vset.pattern.permute.xlu0 2
        %491 = vperm.xlu0 %490, %v366
        %v492 = vpop.permute.xlu0 %491
        %494 = vset.pattern.permute.xlu0 2
        %495 = vperm.xlu0 %494, %v367
        %v496 = vpop.permute.xlu0 %495
        %498 = vset.pattern.permute.xlu0 2
        %499 = vperm.xlu0 %498, %v368
        %v500 = vpop.permute.xlu0 %499
        %502 = vset.pattern.permute.xlu0 2
        %503 = vperm.xlu0 %502, %v369
        %v504 = vpop.permute.xlu0 %503
        %v506 = vlaneseq
        %v507 = vshrl.u32 %v506, 7
        %v508 = vsub.s32 2, %v507
        %v509 = vrot.slane %v361, %v508
        %v510 = vmul.f32 %v476, %v509
        %v511 = vmul.f32 %v480, %v509
        %v512 = vmul.f32 %v484, %v509
        %v513 = vmul.f32 %v488, %v509
        %v514 = vmul.f32 %v492, %v509
        %v515 = vmul.f32 %v496, %v509
        %v516 = vmul.f32 %v500, %v509
        %v517 = vmul.f32 %v504, %v509
        %v518 = vadd.f32 %v466, %v510
        %v519 = vadd.f32 %v467, %v511
        %v520 = vadd.f32 %v468, %v512
        %v521 = vadd.f32 %v469, %v513
        %v522 = vadd.f32 %v470, %v514
        %v523 = vadd.f32 %v471, %v515
        %v524 = vadd.f32 %v472, %v516
        %v525 = vadd.f32 %v473, %v517
        %v526 = vld [vmem:[%s360] sm:$0xff]
        %v527 = vld [vmem:[%s360 + $0x8] sm:$0xff]
        %v528 = vld [vmem:[%s360 + $0x10] sm:$0xff]
        %v529 = vld [vmem:[%s360 + $0x18] sm:$0xff]
        %v530 = vld [vmem:[%s360 + $0x20] sm:$0xff]
        %v531 = vld [vmem:[%s360 + $0x28] sm:$0xff]
        %v532 = vld [vmem:[%s360 + $0x30] sm:$0xff]
        %v533 = vld [vmem:[%s360 + $0x38] sm:$0xff]
        %535 = vset.pattern.permute.xlu0 0
        %536 = vperm.xlu0 %535, %v526
        %v537 = vpop.permute.xlu0 %536
        %540 = vset.pattern.permute.xlu0 0
        %541 = vperm.xlu0 %540, %v527
        %v542 = vpop.permute.xlu0 %541
        %545 = vset.pattern.permute.xlu0 0
        %546 = vperm.xlu0 %545, %v528
        %v547 = vpop.permute.xlu0 %546
        %550 = vset.pattern.permute.xlu0 0
        %551 = vperm.xlu0 %550, %v529
        %v552 = vpop.permute.xlu0 %551
        %555 = vset.pattern.permute.xlu0 0
        %556 = vperm.xlu0 %555, %v530
        %v557 = vpop.permute.xlu0 %556
        %560 = vset.pattern.permute.xlu0 0
        %561 = vperm.xlu0 %560, %v531
        %v562 = vpop.permute.xlu0 %561
        %565 = vset.pattern.permute.xlu0 0
        %566 = vperm.xlu0 %565, %v532
        %v567 = vpop.permute.xlu0 %566
        %570 = vset.pattern.permute.xlu0 0
        %571 = vperm.xlu0 %570, %v533
        %v572 = vpop.permute.xlu0 %571
        %v574 = vadd.f32 %v518, %v537
        %v575 = vadd.f32 %v519, %v542
        %v576 = vadd.f32 %v520, %v547
        %v577 = vadd.f32 %v521, %v552
        %v578 = vadd.f32 %v522, %v557
        %v579 = vadd.f32 %v523, %v562
        %v580 = vadd.f32 %v524, %v567
        %v581 = vadd.f32 %v525, %v572
        %v582 = vand.u32 2147483647, %v574
        %vm583 = vcmp.le.f32.partialorder %v582, 0.7853982
        %vm584 = vcmp.lt.s32.totalorder %v574, 0
        %v585 = vand.u32 %v574, 2139095040
        %v586 = vshrl.u32 %v585, 23
        %v587 = vsub.s32 %v586, 127
        %v588 = vand.u32 2147483647, %v574
        %v589 = vand.u32 %v588, 8388607
        %v590 = vor.u32 %v589, 8388608
        %v591 = vsub.s32 0, %v590
        %v592 = vadd.s32 %v587, 1
        %vm593 = vcmp.gt.s32.totalorder %v592, 0
        %v594 = vsel %vm593, %v592, 0
        %v595 = vshrl.u32 %v594, 5
        %v596 = vand.u32 %v594, 31
        %v597 = vsub.s32 32, %v596
        %v598 = vshrl.u32 683565275, %v597
        %v599 = vshll.u32 683565275, %v596
        %v600 = vshrl.u32 2475754826, %v597
        %v601 = vor.u32 %v599, %v600
        %v602 = vshll.u32 2475754826, %v596
        %v603 = vshrl.u32 2131351028, %v597
        %v604 = vor.u32 %v602, %v603
        %v605 = vshll.u32 2131351028, %v596
        %v606 = vshrl.u32 2102212464, %v597
        %v607 = vor.u32 %v605, %v606
        %v608 = vshll.u32 2102212464, %v596
        %v609 = vshrl.u32 920167782, %v597
        %v610 = vor.u32 %v608, %v609
        %v611 = vshll.u32 920167782, %v596
        %v612 = vshrl.u32 1326507024, %v597
        %v613 = vor.u32 %v611, %v612
        %vm614 = vcmp.lt.s32.totalorder %v595, 1
        %vm615 = vcmp.lt.s32.totalorder %v595, 2
        %vm616 = vcmp.lt.s32.totalorder %v595, 3
        %vm617 = vcmp.lt.s32.totalorder %v595, 4
        %v618 = vsel %vm614, %v598, %v601
        %v619 = vsel %vm617, %v607, 2102212464
        %v620 = vsel %vm616, %v604, %v619
        %v621 = vsel %vm615, %v618, %v620
        %v622 = vsel %vm614, %v601, %v604
        %v623 = vsel %vm617, %v610, 920167782
        %v624 = vsel %vm616, %v607, %v623
        %v625 = vsel %vm615, %v622, %v624
        %v626 = vsel %vm614, %v604, %v607
        %v627 = vsel %vm617, %v613, 1326507024
        %v628 = vsel %vm616, %v610, %v627
        %v629 = vsel %vm615, %v626, %v628
        %v630 = vshll.u32 %v590, 8
        %v631 = vmul.u32.u64.compose %v630, %v629
        %v632 = vextract.low.u32 %v631
        %v633 = vextract.high.u32 %v631
        %v634 = vmul.u32.u64.compose %v630, %v625
        %v635 = vextract.low.u32 %v634
        %v636 = vextract.high.u32 %v634
        %v637 = vmul.u32 %v630, %v621
        %v638 = vadd.s32 %v633, %v635
        %vm639 = vc.u32 %v633, %v635
        %v640 = vadd.s32 %v636, 1
        %v641 = vsel %vm639, %v640, %v636
        %v642 = vadd.s32 %v637, %v641
        %v643 = vadd.s32 %v642, 536870912
        %v644 = vshrl.u32 %v643, 30
        %v645 = vshll.u32 %v644, 30
        %v646 = vsub.s32 %v642, %v645
        %vm647 = vcmp.lt.s32.totalorder %v646, 0
        %v648 = vsub.s32 0, %v646
        %v649 = vsel %vm647, %v648, %v646
        %v650 = vclz %v649
        %v651 = vsub.s32 %v650, 2
        %vm652 = vcmp.gt.s32.totalorder 0, %v651
        %v653 = vsel %vm652, 0, %v651
        %v654 = vsub.s32 32, %v653
        %v655 = vshll.u32 %v646, %v653
        %v656 = vshrl.u32 %v638, %v654
        %v657 = vor.u32 %v655, %v656
        %v658 = vsub.s32 4294967266, %v653
        %v659 = vadd.s32 %v658, 127
        %v660 = vshll.u32 %v659, 23
        %v661 = vor.u32 4788187, %v660
        %v662 = vand.u32 2147483647, %v661
        %v664 = vcvt.s32.f32 %v657
        %v665 = vmul.f32 %v664, %v662
        %v666 = vxor.u32 %v665, 2147483648
        %v667 = vsel %vm584, %v666, %v665
        %v668 = vsub.s32 4, %v644
        %v669 = vsel %vm584, %v668, %v644
        %v670 = vsel %vm583, %v574, %v667
        %v671 = vsel %vm583, 0, %v669
        %v672 = vcosq.f32.pop %v670
        %v673 = vsinq.f32.pop %v670
        %vm674 = vweird.f32 %v574
        %v675 = vadd.s32 %v671, 3
        %v676 = vand.u32 %v675, 3
        %vm677 = vcmp.lt.s32.totalorder %v676, 2
        %vm678 = vcmp.eq.s32.totalorder %v676, 0
        %v679 = vxor.u32 %v673, 2147483648
        %v680 = vsel %vm678, %v672, %v679
        %vm681 = vcmp.eq.s32.totalorder %v676, 2
        %v682 = vxor.u32 %v672, 2147483648
        %v683 = vsel %vm681, %v682, %v673
        %v684 = vsel %vm677, %v680, %v683
        %v685 = vsel %vm674, nan, %v684
        %v686 = vand.u32 2147483647, %v575
        %vm687 = vcmp.le.f32.partialorder %v686, 0.7853982
        %vm688 = vcmp.lt.s32.totalorder %v575, 0
        %v689 = vand.u32 %v575, 2139095040
        %v690 = vshrl.u32 %v689, 23
        %v691 = vsub.s32 %v690, 127
        %v692 = vand.u32 2147483647, %v575
        %v693 = vand.u32 %v692, 8388607
        %v694 = vor.u32 %v693, 8388608
        %v695 = vsub.s32 0, %v694
        %v696 = vadd.s32 %v691, 1
        %vm697 = vcmp.gt.s32.totalorder %v696, 0
        %v698 = vsel %vm697, %v696, 0
        %v699 = vshrl.u32 %v698, 5
        %v700 = vand.u32 %v698, 31
        %v701 = vsub.s32 32, %v700
        %v702 = vshrl.u32 683565275, %v701
        %v703 = vshll.u32 683565275, %v700
        %v704 = vshrl.u32 2475754826, %v701
        %v705 = vor.u32 %v703, %v704
        %v706 = vshll.u32 2475754826, %v700
        %v707 = vshrl.u32 2131351028, %v701
        %v708 = vor.u32 %v706, %v707
        %v709 = vshll.u32 2131351028, %v700
        %v710 = vshrl.u32 2102212464, %v701
        %v711 = vor.u32 %v709, %v710
        %v712 = vshll.u32 2102212464, %v700
        %v713 = vshrl.u32 920167782, %v701
        %v714 = vor.u32 %v712, %v713
        %v715 = vshll.u32 920167782, %v700
        %v716 = vshrl.u32 1326507024, %v701
        %v717 = vor.u32 %v715, %v716
        %vm718 = vcmp.lt.s32.totalorder %v699, 1
        %vm719 = vcmp.lt.s32.totalorder %v699, 2
        %vm720 = vcmp.lt.s32.totalorder %v699, 3
        %vm721 = vcmp.lt.s32.totalorder %v699, 4
        %v722 = vsel %vm718, %v702, %v705
        %v723 = vsel %vm721, %v711, 2102212464
        %v724 = vsel %vm720, %v708, %v723
        %v725 = vsel %vm719, %v722, %v724
        %v726 = vsel %vm718, %v705, %v708
        %v727 = vsel %vm721, %v714, 920167782
        %v728 = vsel %vm720, %v711, %v727
        %v729 = vsel %vm719, %v726, %v728
        %v730 = vsel %vm718, %v708, %v711
        %v731 = vsel %vm721, %v717, 1326507024
        %v732 = vsel %vm720, %v714, %v731
        %v733 = vsel %vm719, %v730, %v732
        %v734 = vshll.u32 %v694, 8
        %v735 = vmul.u32.u64.compose %v734, %v733
        %v736 = vextract.low.u32 %v735
        %v737 = vextract.high.u32 %v735
        %v738 = vmul.u32.u64.compose %v734, %v729
        %v739 = vextract.low.u32 %v738
        %v740 = vextract.high.u32 %v738
        %v741 = vmul.u32 %v734, %v725
        %v742 = vadd.s32 %v737, %v739
        %vm743 = vc.u32 %v737, %v739
        %v744 = vadd.s32 %v740, 1
        %v745 = vsel %vm743, %v744, %v740
        %v746 = vadd.s32 %v741, %v745
        %v747 = vadd.s32 %v746, 536870912
        %v748 = vshrl.u32 %v747, 30
        %v749 = vshll.u32 %v748, 30
        %v750 = vsub.s32 %v746, %v749
        %vm751 = vcmp.lt.s32.totalorder %v750, 0
        %v752 = vsub.s32 0, %v750
        %v753 = vsel %vm751, %v752, %v750
        %v754 = vclz %v753
        %v755 = vsub.s32 %v754, 2
        %vm756 = vcmp.gt.s32.totalorder 0, %v755
        %v757 = vsel %vm756, 0, %v755
        %v758 = vsub.s32 32, %v757
        %v759 = vshll.u32 %v750, %v757
        %v760 = vshrl.u32 %v742, %v758
        %v761 = vor.u32 %v759, %v760
        %v762 = vsub.s32 4294967266, %v757
        %v763 = vadd.s32 %v762, 127
        %v764 = vshll.u32 %v763, 23
        %v765 = vor.u32 4788187, %v764
        %v766 = vand.u32 2147483647, %v765
        %v768 = vcvt.s32.f32 %v761
        %v769 = vmul.f32 %v768, %v766
        %v770 = vxor.u32 %v769, 2147483648
        %v771 = vsel %vm688, %v770, %v769
        %v772 = vsub.s32 4, %v748
        %v773 = vsel %vm688, %v772, %v748
        %v774 = vsel %vm687, %v575, %v771
        %v775 = vsel %vm687, 0, %v773
        %v776 = vcosq.f32.pop %v774
        %v777 = vsinq.f32.pop %v774
        %vm778 = vweird.f32 %v575
        %v779 = vadd.s32 %v775, 3
        %v780 = vand.u32 %v779, 3
        %vm781 = vcmp.lt.s32.totalorder %v780, 2
        %vm782 = vcmp.eq.s32.totalorder %v780, 0
        %v783 = vxor.u32 %v777, 2147483648
        %v784 = vsel %vm782, %v776, %v783
        %vm785 = vcmp.eq.s32.totalorder %v780, 2
        %v786 = vxor.u32 %v776, 2147483648
        %v787 = vsel %vm785, %v786, %v777
        %v788 = vsel %vm781, %v784, %v787
        %v789 = vsel %vm778, nan, %v788
        %v790 = vand.u32 2147483647, %v576
        %vm791 = vcmp.le.f32.partialorder %v790, 0.7853982
        %vm792 = vcmp.lt.s32.totalorder %v576, 0
        %v793 = vand.u32 %v576, 2139095040
        %v794 = vshrl.u32 %v793, 23
        %v795 = vsub.s32 %v794, 127
        %v796 = vand.u32 2147483647, %v576
        %v797 = vand.u32 %v796, 8388607
        %v798 = vor.u32 %v797, 8388608
        %v799 = vsub.s32 0, %v798
        %v800 = vadd.s32 %v795, 1
        %vm801 = vcmp.gt.s32.totalorder %v800, 0
        %v802 = vsel %vm801, %v800, 0
        %v803 = vshrl.u32 %v802, 5
        %v804 = vand.u32 %v802, 31
        %v805 = vsub.s32 32, %v804
        %v806 = vshrl.u32 683565275, %v805
        %v807 = vshll.u32 683565275, %v804
        %v808 = vshrl.u32 2475754826, %v805
        %v809 = vor.u32 %v807, %v808
        %v810 = vshll.u32 2475754826, %v804
        %v811 = vshrl.u32 2131351028, %v805
        %v812 = vor.u32 %v810, %v811
        %v813 = vshll.u32 2131351028, %v804
        %v814 = vshrl.u32 2102212464, %v805
        %v815 = vor.u32 %v813, %v814
        %v816 = vshll.u32 2102212464, %v804
        %v817 = vshrl.u32 920167782, %v805
        %v818 = vor.u32 %v816, %v817
        %v819 = vshll.u32 920167782, %v804
        %v820 = vshrl.u32 1326507024, %v805
        %v821 = vor.u32 %v819, %v820
        %vm822 = vcmp.lt.s32.totalorder %v803, 1
        %vm823 = vcmp.lt.s32.totalorder %v803, 2
        %vm824 = vcmp.lt.s32.totalorder %v803, 3
        %vm825 = vcmp.lt.s32.totalorder %v803, 4
        %v826 = vsel %vm822, %v806, %v809
        %v827 = vsel %vm825, %v815, 2102212464
        %v828 = vsel %vm824, %v812, %v827
        %v829 = vsel %vm823, %v826, %v828
        %v830 = vsel %vm822, %v809, %v812
        %v831 = vsel %vm825, %v818, 920167782
        %v832 = vsel %vm824, %v815, %v831
        %v833 = vsel %vm823, %v830, %v832
        %v834 = vsel %vm822, %v812, %v815
        %v835 = vsel %vm825, %v821, 1326507024
        %v836 = vsel %vm824, %v818, %v835
        %v837 = vsel %vm823, %v834, %v836
        %v838 = vshll.u32 %v798, 8
        %v839 = vmul.u32.u64.compose %v838, %v837
        %v840 = vextract.low.u32 %v839
        %v841 = vextract.high.u32 %v839
        %v842 = vmul.u32.u64.compose %v838, %v833
        %v843 = vextract.low.u32 %v842
        %v844 = vextract.high.u32 %v842
        %v845 = vmul.u32 %v838, %v829
        %v846 = vadd.s32 %v841, %v843
        %vm847 = vc.u32 %v841, %v843
        %v848 = vadd.s32 %v844, 1
        %v849 = vsel %vm847, %v848, %v844
        %v850 = vadd.s32 %v845, %v849
        %v851 = vadd.s32 %v850, 536870912
        %v852 = vshrl.u32 %v851, 30
        %v853 = vshll.u32 %v852, 30
        %v854 = vsub.s32 %v850, %v853
        %vm855 = vcmp.lt.s32.totalorder %v854, 0
        %v856 = vsub.s32 0, %v854
        %v857 = vsel %vm855, %v856, %v854
        %v858 = vclz %v857
        %v859 = vsub.s32 %v858, 2
        %vm860 = vcmp.gt.s32.totalorder 0, %v859
        %v861 = vsel %vm860, 0, %v859
        %v862 = vsub.s32 32, %v861
        %v863 = vshll.u32 %v854, %v861
        %v864 = vshrl.u32 %v846, %v862
        %v865 = vor.u32 %v863, %v864
        %v866 = vsub.s32 4294967266, %v861
        %v867 = vadd.s32 %v866, 127
        %v868 = vshll.u32 %v867, 23
        %v869 = vor.u32 4788187, %v868
        %v870 = vand.u32 2147483647, %v869
        %v872 = vcvt.s32.f32 %v865
        %v873 = vmul.f32 %v872, %v870
        %v874 = vxor.u32 %v873, 2147483648
        %v875 = vsel %vm792, %v874, %v873
        %v876 = vsub.s32 4, %v852
        %v877 = vsel %vm792, %v876, %v852
        %v878 = vsel %vm791, %v576, %v875
        %v879 = vsel %vm791, 0, %v877
        %v880 = vcosq.f32.pop %v878
        %v881 = vsinq.f32.pop %v878
        %vm882 = vweird.f32 %v576
        %v883 = vadd.s32 %v879, 3
        %v884 = vand.u32 %v883, 3
        %vm885 = vcmp.lt.s32.totalorder %v884, 2
        %vm886 = vcmp.eq.s32.totalorder %v884, 0
        %v887 = vxor.u32 %v881, 2147483648
        %v888 = vsel %vm886, %v880, %v887
        %vm889 = vcmp.eq.s32.totalorder %v884, 2
        %v890 = vxor.u32 %v880, 2147483648
        %v891 = vsel %vm889, %v890, %v881
        %v892 = vsel %vm885, %v888, %v891
        %v893 = vsel %vm882, nan, %v892
        %v894 = vand.u32 2147483647, %v577
        %vm895 = vcmp.le.f32.partialorder %v894, 0.7853982
        %vm896 = vcmp.lt.s32.totalorder %v577, 0
        %v897 = vand.u32 %v577, 2139095040
        %v898 = vshrl.u32 %v897, 23
        %v899 = vsub.s32 %v898, 127
        %v900 = vand.u32 2147483647, %v577
        %v901 = vand.u32 %v900, 8388607
        %v902 = vor.u32 %v901, 8388608
        %v903 = vsub.s32 0, %v902
        %v904 = vadd.s32 %v899, 1
        %vm905 = vcmp.gt.s32.totalorder %v904, 0
        %v906 = vsel %vm905, %v904, 0
        %v907 = vshrl.u32 %v906, 5
        %v908 = vand.u32 %v906, 31
        %v909 = vsub.s32 32, %v908
        %v910 = vshrl.u32 683565275, %v909
        %v911 = vshll.u32 683565275, %v908
        %v912 = vshrl.u32 2475754826, %v909
        %v913 = vor.u32 %v911, %v912
        %v914 = vshll.u32 2475754826, %v908
        %v915 = vshrl.u32 2131351028, %v909
        %v916 = vor.u32 %v914, %v915
        %v917 = vshll.u32 2131351028, %v908
        %v918 = vshrl.u32 2102212464, %v909
        %v919 = vor.u32 %v917, %v918
        %v920 = vshll.u32 2102212464, %v908
        %v921 = vshrl.u32 920167782, %v909
        %v922 = vor.u32 %v920, %v921
        %v923 = vshll.u32 920167782, %v908
        %v924 = vshrl.u32 1326507024, %v909
        %v925 = vor.u32 %v923, %v924
        %vm926 = vcmp.lt.s32.totalorder %v907, 1
        %vm927 = vcmp.lt.s32.totalorder %v907, 2
        %vm928 = vcmp.lt.s32.totalorder %v907, 3
        %vm929 = vcmp.lt.s32.totalorder %v907, 4
        %v930 = vsel %vm926, %v910, %v913
        %v931 = vsel %vm929, %v919, 2102212464
        %v932 = vsel %vm928, %v916, %v931
        %v933 = vsel %vm927, %v930, %v932
        %v934 = vsel %vm926, %v913, %v916
        %v935 = vsel %vm929, %v922, 920167782
        %v936 = vsel %vm928, %v919, %v935
        %v937 = vsel %vm927, %v934, %v936
        %v938 = vsel %vm926, %v916, %v919
        %v939 = vsel %vm929, %v925, 1326507024
        %v940 = vsel %vm928, %v922, %v939
        %v941 = vsel %vm927, %v938, %v940
        %v942 = vshll.u32 %v902, 8
        %v943 = vmul.u32.u64.compose %v942, %v941
        %v944 = vextract.low.u32 %v943
        %v945 = vextract.high.u32 %v943
        %v946 = vmul.u32.u64.compose %v942, %v937
        %v947 = vextract.low.u32 %v946
        %v948 = vextract.high.u32 %v946
        %v949 = vmul.u32 %v942, %v933
        %v950 = vadd.s32 %v945, %v947
        %vm951 = vc.u32 %v945, %v947
        %v952 = vadd.s32 %v948, 1
        %v953 = vsel %vm951, %v952, %v948
        %v954 = vadd.s32 %v949, %v953
        %v955 = vadd.s32 %v954, 536870912
        %v956 = vshrl.u32 %v955, 30
        %v957 = vshll.u32 %v956, 30
        %v958 = vsub.s32 %v954, %v957
        %vm959 = vcmp.lt.s32.totalorder %v958, 0
        %v960 = vsub.s32 0, %v958
        %v961 = vsel %vm959, %v960, %v958
        %v962 = vclz %v961
        %v963 = vsub.s32 %v962, 2
        %vm964 = vcmp.gt.s32.totalorder 0, %v963
        %v965 = vsel %vm964, 0, %v963
        %v966 = vsub.s32 32, %v965
        %v967 = vshll.u32 %v958, %v965
        %v968 = vshrl.u32 %v950, %v966
        %v969 = vor.u32 %v967, %v968
        %v970 = vsub.s32 4294967266, %v965
        %v971 = vadd.s32 %v970, 127
        %v972 = vshll.u32 %v971, 23
        %v973 = vor.u32 4788187, %v972
        %v974 = vand.u32 2147483647, %v973
        %v976 = vcvt.s32.f32 %v969
        %v977 = vmul.f32 %v976, %v974
        %v978 = vxor.u32 %v977, 2147483648
        %v979 = vsel %vm896, %v978, %v977
        %v980 = vsub.s32 4, %v956
        %v981 = vsel %vm896, %v980, %v956
        %v982 = vsel %vm895, %v577, %v979
        %v983 = vsel %vm895, 0, %v981
        %v984 = vcosq.f32.pop %v982
        %v985 = vsinq.f32.pop %v982
        %vm986 = vweird.f32 %v577
        %v987 = vadd.s32 %v983, 3
        %v988 = vand.u32 %v987, 3
        %vm989 = vcmp.lt.s32.totalorder %v988, 2
        %vm990 = vcmp.eq.s32.totalorder %v988, 0
        %v991 = vxor.u32 %v985, 2147483648
        %v992 = vsel %vm990, %v984, %v991
        %vm993 = vcmp.eq.s32.totalorder %v988, 2
        %v994 = vxor.u32 %v984, 2147483648
        %v995 = vsel %vm993, %v994, %v985
        %v996 = vsel %vm989, %v992, %v995
        %v997 = vsel %vm986, nan, %v996
        %v998 = vand.u32 2147483647, %v578
        %vm999 = vcmp.le.f32.partialorder %v998, 0.7853982
        %vm1000 = vcmp.lt.s32.totalorder %v578, 0
        %v1001 = vand.u32 %v578, 2139095040
        %v1002 = vshrl.u32 %v1001, 23
        %v1003 = vsub.s32 %v1002, 127
        %v1004 = vand.u32 2147483647, %v578
        %v1005 = vand.u32 %v1004, 8388607
        %v1006 = vor.u32 %v1005, 8388608
        %v1007 = vsub.s32 0, %v1006
        %v1008 = vadd.s32 %v1003, 1
        %vm1009 = vcmp.gt.s32.totalorder %v1008, 0
        %v1010 = vsel %vm1009, %v1008, 0
        %v1011 = vshrl.u32 %v1010, 5
        %v1012 = vand.u32 %v1010, 31
        %v1013 = vsub.s32 32, %v1012
        %v1014 = vshrl.u32 683565275, %v1013
        %v1015 = vshll.u32 683565275, %v1012
        %v1016 = vshrl.u32 2475754826, %v1013
        %v1017 = vor.u32 %v1015, %v1016
        %v1018 = vshll.u32 2475754826, %v1012
        %v1019 = vshrl.u32 2131351028, %v1013
        %v1020 = vor.u32 %v1018, %v1019
        %v1021 = vshll.u32 2131351028, %v1012
        %v1022 = vshrl.u32 2102212464, %v1013
        %v1023 = vor.u32 %v1021, %v1022
        %v1024 = vshll.u32 2102212464, %v1012
        %v1025 = vshrl.u32 920167782, %v1013
        %v1026 = vor.u32 %v1024, %v1025
        %v1027 = vshll.u32 920167782, %v1012
        %v1028 = vshrl.u32 1326507024, %v1013
        %v1029 = vor.u32 %v1027, %v1028
        %vm1030 = vcmp.lt.s32.totalorder %v1011, 1
        %vm1031 = vcmp.lt.s32.totalorder %v1011, 2
        %vm1032 = vcmp.lt.s32.totalorder %v1011, 3
        %vm1033 = vcmp.lt.s32.totalorder %v1011, 4
        %v1034 = vsel %vm1030, %v1014, %v1017
        %v1035 = vsel %vm1033, %v1023, 2102212464
        %v1036 = vsel %vm1032, %v1020, %v1035
        %v1037 = vsel %vm1031, %v1034, %v1036
        %v1038 = vsel %vm1030, %v1017, %v1020
        %v1039 = vsel %vm1033, %v1026, 920167782
        %v1040 = vsel %vm1032, %v1023, %v1039
        %v1041 = vsel %vm1031, %v1038, %v1040
        %v1042 = vsel %vm1030, %v1020, %v1023
        %v1043 = vsel %vm1033, %v1029, 1326507024
        %v1044 = vsel %vm1032, %v1026, %v1043
        %v1045 = vsel %vm1031, %v1042, %v1044
        %v1046 = vshll.u32 %v1006, 8
        %v1047 = vmul.u32.u64.compose %v1046, %v1045
        %v1048 = vextract.low.u32 %v1047
        %v1049 = vextract.high.u32 %v1047
        %v1050 = vmul.u32.u64.compose %v1046, %v1041
        %v1051 = vextract.low.u32 %v1050
        %v1052 = vextract.high.u32 %v1050
        %v1053 = vmul.u32 %v1046, %v1037
        %v1054 = vadd.s32 %v1049, %v1051
        %vm1055 = vc.u32 %v1049, %v1051
        %v1056 = vadd.s32 %v1052, 1
        %v1057 = vsel %vm1055, %v1056, %v1052
        %v1058 = vadd.s32 %v1053, %v1057
        %v1059 = vadd.s32 %v1058, 536870912
        %v1060 = vshrl.u32 %v1059, 30
        %v1061 = vshll.u32 %v1060, 30
        %v1062 = vsub.s32 %v1058, %v1061
        %vm1063 = vcmp.lt.s32.totalorder %v1062, 0
        %v1064 = vsub.s32 0, %v1062
        %v1065 = vsel %vm1063, %v1064, %v1062
        %v1066 = vclz %v1065
        %v1067 = vsub.s32 %v1066, 2
        %vm1068 = vcmp.gt.s32.totalorder 0, %v1067
        %v1069 = vsel %vm1068, 0, %v1067
        %v1070 = vsub.s32 32, %v1069
        %v1071 = vshll.u32 %v1062, %v1069
        %v1072 = vshrl.u32 %v1054, %v1070
        %v1073 = vor.u32 %v1071, %v1072
        %v1074 = vsub.s32 4294967266, %v1069
        %v1075 = vadd.s32 %v1074, 127
        %v1076 = vshll.u32 %v1075, 23
        %v1077 = vor.u32 4788187, %v1076
        %v1078 = vand.u32 2147483647, %v1077
        %v1080 = vcvt.s32.f32 %v1073
        %v1081 = vmul.f32 %v1080, %v1078
        %v1082 = vxor.u32 %v1081, 2147483648
        %v1083 = vsel %vm1000, %v1082, %v1081
        %v1084 = vsub.s32 4, %v1060
        %v1085 = vsel %vm1000, %v1084, %v1060
        %v1086 = vsel %vm999, %v578, %v1083
        %v1087 = vsel %vm999, 0, %v1085
        %v1088 = vcosq.f32.pop %v1086
        %v1089 = vsinq.f32.pop %v1086
        %vm1090 = vweird.f32 %v578
        %v1091 = vadd.s32 %v1087, 3
        %v1092 = vand.u32 %v1091, 3
        %vm1093 = vcmp.lt.s32.totalorder %v1092, 2
        %vm1094 = vcmp.eq.s32.totalorder %v1092, 0
        %v1095 = vxor.u32 %v1089, 2147483648
        %v1096 = vsel %vm1094, %v1088, %v1095
        %vm1097 = vcmp.eq.s32.totalorder %v1092, 2
        %v1098 = vxor.u32 %v1088, 2147483648
        %v1099 = vsel %vm1097, %v1098, %v1089
        %v1100 = vsel %vm1093, %v1096, %v1099
        %v1101 = vsel %vm1090, nan, %v1100
        %v1102 = vand.u32 2147483647, %v579
        %vm1103 = vcmp.le.f32.partialorder %v1102, 0.7853982
        %vm1104 = vcmp.lt.s32.totalorder %v579, 0
        %v1105 = vand.u32 %v579, 2139095040
        %v1106 = vshrl.u32 %v1105, 23
        %v1107 = vsub.s32 %v1106, 127
        %v1108 = vand.u32 2147483647, %v579
        %v1109 = vand.u32 %v1108, 8388607
        %v1110 = vor.u32 %v1109, 8388608
        %v1111 = vsub.s32 0, %v1110
        %v1112 = vadd.s32 %v1107, 1
        %vm1113 = vcmp.gt.s32.totalorder %v1112, 0
        %v1114 = vsel %vm1113, %v1112, 0
        %v1115 = vshrl.u32 %v1114, 5
        %v1116 = vand.u32 %v1114, 31
        %v1117 = vsub.s32 32, %v1116
        %v1118 = vshrl.u32 683565275, %v1117
        %v1119 = vshll.u32 683565275, %v1116
        %v1120 = vshrl.u32 2475754826, %v1117
        %v1121 = vor.u32 %v1119, %v1120
        %v1122 = vshll.u32 2475754826, %v1116
        %v1123 = vshrl.u32 2131351028, %v1117
        %v1124 = vor.u32 %v1122, %v1123
        %v1125 = vshll.u32 2131351028, %v1116
        %v1126 = vshrl.u32 2102212464, %v1117
        %v1127 = vor.u32 %v1125, %v1126
        %v1128 = vshll.u32 2102212464, %v1116
        %v1129 = vshrl.u32 920167782, %v1117
        %v1130 = vor.u32 %v1128, %v1129
        %v1131 = vshll.u32 920167782, %v1116
        %v1132 = vshrl.u32 1326507024, %v1117
        %v1133 = vor.u32 %v1131, %v1132
        %vm1134 = vcmp.lt.s32.totalorder %v1115, 1
        %vm1135 = vcmp.lt.s32.totalorder %v1115, 2
        %vm1136 = vcmp.lt.s32.totalorder %v1115, 3
        %vm1137 = vcmp.lt.s32.totalorder %v1115, 4
        %v1138 = vsel %vm1134, %v1118, %v1121
        %v1139 = vsel %vm1137, %v1127, 2102212464
        %v1140 = vsel %vm1136, %v1124, %v1139
        %v1141 = vsel %vm1135, %v1138, %v1140
        %v1142 = vsel %vm1134, %v1121, %v1124
        %v1143 = vsel %vm1137, %v1130, 920167782
        %v1144 = vsel %vm1136, %v1127, %v1143
        %v1145 = vsel %vm1135, %v1142, %v1144
        %v1146 = vsel %vm1134, %v1124, %v1127
        %v1147 = vsel %vm1137, %v1133, 1326507024
        %v1148 = vsel %vm1136, %v1130, %v1147
        %v1149 = vsel %vm1135, %v1146, %v1148
        %v1150 = vshll.u32 %v1110, 8
        %v1151 = vmul.u32.u64.compose %v1150, %v1149
        %v1152 = vextract.low.u32 %v1151
        %v1153 = vextract.high.u32 %v1151
        %v1154 = vmul.u32.u64.compose %v1150, %v1145
        %v1155 = vextract.low.u32 %v1154
        %v1156 = vextract.high.u32 %v1154
        %v1157 = vmul.u32 %v1150, %v1141
        %v1158 = vadd.s32 %v1153, %v1155
        %vm1159 = vc.u32 %v1153, %v1155
        %v1160 = vadd.s32 %v1156, 1
        %v1161 = vsel %vm1159, %v1160, %v1156
        %v1162 = vadd.s32 %v1157, %v1161
        %v1163 = vadd.s32 %v1162, 536870912
        %v1164 = vshrl.u32 %v1163, 30
        %v1165 = vshll.u32 %v1164, 30
        %v1166 = vsub.s32 %v1162, %v1165
        %vm1167 = vcmp.lt.s32.totalorder %v1166, 0
        %v1168 = vsub.s32 0, %v1166
        %v1169 = vsel %vm1167, %v1168, %v1166
        %v1170 = vclz %v1169
        %v1171 = vsub.s32 %v1170, 2
        %vm1172 = vcmp.gt.s32.totalorder 0, %v1171
        %v1173 = vsel %vm1172, 0, %v1171
        %v1174 = vsub.s32 32, %v1173
        %v1175 = vshll.u32 %v1166, %v1173
        %v1176 = vshrl.u32 %v1158, %v1174
        %v1177 = vor.u32 %v1175, %v1176
        %v1178 = vsub.s32 4294967266, %v1173
        %v1179 = vadd.s32 %v1178, 127
        %v1180 = vshll.u32 %v1179, 23
        %v1181 = vor.u32 4788187, %v1180
        %v1182 = vand.u32 2147483647, %v1181
        %v1184 = vcvt.s32.f32 %v1177
        %v1185 = vmul.f32 %v1184, %v1182
        %v1186 = vxor.u32 %v1185, 2147483648
        %v1187 = vsel %vm1104, %v1186, %v1185
        %v1188 = vsub.s32 4, %v1164
        %v1189 = vsel %vm1104, %v1188, %v1164
        %v1190 = vsel %vm1103, %v579, %v1187
        %v1191 = vsel %vm1103, 0, %v1189
        %v1192 = vcosq.f32.pop %v1190
        %v1193 = vsinq.f32.pop %v1190
        %vm1194 = vweird.f32 %v579
        %v1195 = vadd.s32 %v1191, 3
        %v1196 = vand.u32 %v1195, 3
        %vm1197 = vcmp.lt.s32.totalorder %v1196, 2
        %vm1198 = vcmp.eq.s32.totalorder %v1196, 0
        %v1199 = vxor.u32 %v1193, 2147483648
        %v1200 = vsel %vm1198, %v1192, %v1199
        %vm1201 = vcmp.eq.s32.totalorder %v1196, 2
        %v1202 = vxor.u32 %v1192, 2147483648
        %v1203 = vsel %vm1201, %v1202, %v1193
        %v1204 = vsel %vm1197, %v1200, %v1203
        %v1205 = vsel %vm1194, nan, %v1204
        %v1206 = vand.u32 2147483647, %v580
        %vm1207 = vcmp.le.f32.partialorder %v1206, 0.7853982
        %vm1208 = vcmp.lt.s32.totalorder %v580, 0
        %v1209 = vand.u32 %v580, 2139095040
        %v1210 = vshrl.u32 %v1209, 23
        %v1211 = vsub.s32 %v1210, 127
        %v1212 = vand.u32 2147483647, %v580
        %v1213 = vand.u32 %v1212, 8388607
        %v1214 = vor.u32 %v1213, 8388608
        %v1215 = vsub.s32 0, %v1214
        %v1216 = vadd.s32 %v1211, 1
        %vm1217 = vcmp.gt.s32.totalorder %v1216, 0
        %v1218 = vsel %vm1217, %v1216, 0
        %v1219 = vshrl.u32 %v1218, 5
        %v1220 = vand.u32 %v1218, 31
        %v1221 = vsub.s32 32, %v1220
        %v1222 = vshrl.u32 683565275, %v1221
        %v1223 = vshll.u32 683565275, %v1220
        %v1224 = vshrl.u32 2475754826, %v1221
        %v1225 = vor.u32 %v1223, %v1224
        %v1226 = vshll.u32 2475754826, %v1220
        %v1227 = vshrl.u32 2131351028, %v1221
        %v1228 = vor.u32 %v1226, %v1227
        %v1229 = vshll.u32 2131351028, %v1220
        %v1230 = vshrl.u32 2102212464, %v1221
        %v1231 = vor.u32 %v1229, %v1230
        %v1232 = vshll.u32 2102212464, %v1220
        %v1233 = vshrl.u32 920167782, %v1221
        %v1234 = vor.u32 %v1232, %v1233
        %v1235 = vshll.u32 920167782, %v1220
        %v1236 = vshrl.u32 1326507024, %v1221
        %v1237 = vor.u32 %v1235, %v1236
        %vm1238 = vcmp.lt.s32.totalorder %v1219, 1
        %vm1239 = vcmp.lt.s32.totalorder %v1219, 2
        %vm1240 = vcmp.lt.s32.totalorder %v1219, 3
        %vm1241 = vcmp.lt.s32.totalorder %v1219, 4
        %v1242 = vsel %vm1238, %v1222, %v1225
        %v1243 = vsel %vm1241, %v1231, 2102212464
        %v1244 = vsel %vm1240, %v1228, %v1243
        %v1245 = vsel %vm1239, %v1242, %v1244
        %v1246 = vsel %vm1238, %v1225, %v1228
        %v1247 = vsel %vm1241, %v1234, 920167782
        %v1248 = vsel %vm1240, %v1231, %v1247
        %v1249 = vsel %vm1239, %v1246, %v1248
        %v1250 = vsel %vm1238, %v1228, %v1231
        %v1251 = vsel %vm1241, %v1237, 1326507024
        %v1252 = vsel %vm1240, %v1234, %v1251
        %v1253 = vsel %vm1239, %v1250, %v1252
        %v1254 = vshll.u32 %v1214, 8
        %v1255 = vmul.u32.u64.compose %v1254, %v1253
        %v1256 = vextract.low.u32 %v1255
        %v1257 = vextract.high.u32 %v1255
        %v1258 = vmul.u32.u64.compose %v1254, %v1249
        %v1259 = vextract.low.u32 %v1258
        %v1260 = vextract.high.u32 %v1258
        %v1261 = vmul.u32 %v1254, %v1245
        %v1262 = vadd.s32 %v1257, %v1259
        %vm1263 = vc.u32 %v1257, %v1259
        %v1264 = vadd.s32 %v1260, 1
        %v1265 = vsel %vm1263, %v1264, %v1260
        %v1266 = vadd.s32 %v1261, %v1265
        %v1267 = vadd.s32 %v1266, 536870912
        %v1268 = vshrl.u32 %v1267, 30
        %v1269 = vshll.u32 %v1268, 30
        %v1270 = vsub.s32 %v1266, %v1269
        %vm1271 = vcmp.lt.s32.totalorder %v1270, 0
        %v1272 = vsub.s32 0, %v1270
        %v1273 = vsel %vm1271, %v1272, %v1270
        %v1274 = vclz %v1273
        %v1275 = vsub.s32 %v1274, 2
        %vm1276 = vcmp.gt.s32.totalorder 0, %v1275
        %v1277 = vsel %vm1276, 0, %v1275
        %v1278 = vsub.s32 32, %v1277
        %v1279 = vshll.u32 %v1270, %v1277
        %v1280 = vshrl.u32 %v1262, %v1278
        %v1281 = vor.u32 %v1279, %v1280
        %v1282 = vsub.s32 4294967266, %v1277
        %v1283 = vadd.s32 %v1282, 127
        %v1284 = vshll.u32 %v1283, 23
        %v1285 = vor.u32 4788187, %v1284
        %v1286 = vand.u32 2147483647, %v1285
        %v1288 = vcvt.s32.f32 %v1281
        %v1289 = vmul.f32 %v1288, %v1286
        %v1290 = vxor.u32 %v1289, 2147483648
        %v1291 = vsel %vm1208, %v1290, %v1289
        %v1292 = vsub.s32 4, %v1268
        %v1293 = vsel %vm1208, %v1292, %v1268
        %v1294 = vsel %vm1207, %v580, %v1291
        %v1295 = vsel %vm1207, 0, %v1293
        %v1296 = vcosq.f32.pop %v1294
        %v1297 = vsinq.f32.pop %v1294
        %vm1298 = vweird.f32 %v580
        %v1299 = vadd.s32 %v1295, 3
        %v1300 = vand.u32 %v1299, 3
        %vm1301 = vcmp.lt.s32.totalorder %v1300, 2
        %vm1302 = vcmp.eq.s32.totalorder %v1300, 0
        %v1303 = vxor.u32 %v1297, 2147483648
        %v1304 = vsel %vm1302, %v1296, %v1303
        %vm1305 = vcmp.eq.s32.totalorder %v1300, 2
        %v1306 = vxor.u32 %v1296, 2147483648
        %v1307 = vsel %vm1305, %v1306, %v1297
        %v1308 = vsel %vm1301, %v1304, %v1307
        %v1309 = vsel %vm1298, nan, %v1308
        %v1310 = vand.u32 2147483647, %v581
        %vm1311 = vcmp.le.f32.partialorder %v1310, 0.7853982
        %vm1312 = vcmp.lt.s32.totalorder %v581, 0
        %v1313 = vand.u32 %v581, 2139095040
        %v1314 = vshrl.u32 %v1313, 23
        %v1315 = vsub.s32 %v1314, 127
        %v1316 = vand.u32 2147483647, %v581
        %v1317 = vand.u32 %v1316, 8388607
        %v1318 = vor.u32 %v1317, 8388608
        %v1319 = vsub.s32 0, %v1318
        %v1320 = vadd.s32 %v1315, 1
        %vm1321 = vcmp.gt.s32.totalorder %v1320, 0
        %v1322 = vsel %vm1321, %v1320, 0
        %v1323 = vshrl.u32 %v1322, 5
        %v1324 = vand.u32 %v1322, 31
        %v1325 = vsub.s32 32, %v1324
        %v1326 = vshrl.u32 683565275, %v1325
        %v1327 = vshll.u32 683565275, %v1324
        %v1328 = vshrl.u32 2475754826, %v1325
        %v1329 = vor.u32 %v1327, %v1328
        %v1330 = vshll.u32 2475754826, %v1324
        %v1331 = vshrl.u32 2131351028, %v1325
        %v1332 = vor.u32 %v1330, %v1331
        %v1333 = vshll.u32 2131351028, %v1324
        %v1334 = vshrl.u32 2102212464, %v1325
        %v1335 = vor.u32 %v1333, %v1334
        %v1336 = vshll.u32 2102212464, %v1324
        %v1337 = vshrl.u32 920167782, %v1325
        %v1338 = vor.u32 %v1336, %v1337
        %v1339 = vshll.u32 920167782, %v1324
        %v1340 = vshrl.u32 1326507024, %v1325
        %v1341 = vor.u32 %v1339, %v1340
        %vm1342 = vcmp.lt.s32.totalorder %v1323, 1
        %vm1343 = vcmp.lt.s32.totalorder %v1323, 2
        %vm1344 = vcmp.lt.s32.totalorder %v1323, 3
        %vm1345 = vcmp.lt.s32.totalorder %v1323, 4
        %v1346 = vsel %vm1342, %v1326, %v1329
        %v1347 = vsel %vm1345, %v1335, 2102212464
        %v1348 = vsel %vm1344, %v1332, %v1347
        %v1349 = vsel %vm1343, %v1346, %v1348
        %v1350 = vsel %vm1342, %v1329, %v1332
        %v1351 = vsel %vm1345, %v1338, 920167782
        %v1352 = vsel %vm1344, %v1335, %v1351
        %v1353 = vsel %vm1343, %v1350, %v1352
        %v1354 = vsel %vm1342, %v1332, %v1335
        %v1355 = vsel %vm1345, %v1341, 1326507024
        %v1356 = vsel %vm1344, %v1338, %v1355
        %v1357 = vsel %vm1343, %v1354, %v1356
        %v1358 = vshll.u32 %v1318, 8
        %v1359 = vmul.u32.u64.compose %v1358, %v1357
        %v1360 = vextract.low.u32 %v1359
        %v1361 = vextract.high.u32 %v1359
        %v1362 = vmul.u32.u64.compose %v1358, %v1353
        %v1363 = vextract.low.u32 %v1362
        %v1364 = vextract.high.u32 %v1362
        %v1365 = vmul.u32 %v1358, %v1349
        %v1366 = vadd.s32 %v1361, %v1363
        %vm1367 = vc.u32 %v1361, %v1363
        %v1368 = vadd.s32 %v1364, 1
        %v1369 = vsel %vm1367, %v1368, %v1364
        %v1370 = vadd.s32 %v1365, %v1369
        %v1371 = vadd.s32 %v1370, 536870912
        %v1372 = vshrl.u32 %v1371, 30
        %v1373 = vshll.u32 %v1372, 30
        %v1374 = vsub.s32 %v1370, %v1373
        %vm1375 = vcmp.lt.s32.totalorder %v1374, 0
        %v1376 = vsub.s32 0, %v1374
        %v1377 = vsel %vm1375, %v1376, %v1374
        %v1378 = vclz %v1377
        %v1379 = vsub.s32 %v1378, 2
        %vm1380 = vcmp.gt.s32.totalorder 0, %v1379
        %v1381 = vsel %vm1380, 0, %v1379
        %v1382 = vsub.s32 32, %v1381
        %v1383 = vshll.u32 %v1374, %v1381
        %v1384 = vshrl.u32 %v1366, %v1382
        %v1385 = vor.u32 %v1383, %v1384
        %v1386 = vsub.s32 4294967266, %v1381
        %v1387 = vadd.s32 %v1386, 127
        %v1388 = vshll.u32 %v1387, 23
        %v1389 = vor.u32 4788187, %v1388
        %v1390 = vand.u32 2147483647, %v1389
        %v1392 = vcvt.s32.f32 %v1385
        %v1393 = vmul.f32 %v1392, %v1390
        %v1394 = vxor.u32 %v1393, 2147483648
        %v1395 = vsel %vm1312, %v1394, %v1393
        %v1396 = vsub.s32 4, %v1372
        %v1397 = vsel %vm1312, %v1396, %v1372
        %v1398 = vsel %vm1311, %v581, %v1395
        %v1399 = vsel %vm1311, 0, %v1397
        %v1400 = vcosq.f32.pop %v1398
        %v1401 = vsinq.f32.pop %v1398
        %vm1402 = vweird.f32 %v581
        %v1403 = vadd.s32 %v1399, 3
        %v1404 = vand.u32 %v1403, 3
        %vm1405 = vcmp.lt.s32.totalorder %v1404, 2
        %vm1406 = vcmp.eq.s32.totalorder %v1404, 0
        %v1407 = vxor.u32 %v1401, 2147483648
        %v1408 = vsel %vm1406, %v1400, %v1407
        %vm1409 = vcmp.eq.s32.totalorder %v1404, 2
        %v1410 = vxor.u32 %v1400, 2147483648
        %v1411 = vsel %vm1409, %v1410, %v1401
        %v1412 = vsel %vm1405, %v1408, %v1411
        %v1413 = vsel %vm1402, nan, %v1412
        %v1414 = vld [vmem:[%s3] sm:$0xff]
        %v1415 = vld [vmem:[%s3 + $0x8] sm:$0xff]
        %v1416 = vld [vmem:[%s4] sm:$0xff]
        %v1417 = vld [vmem:[%s4 + $0x8] sm:$0xff]
        %1419 = vset.pattern.permute.xlu0 0
        %1420 = vperm.xlu0 %1419, %v1416
        %v1421 = vpop.permute.xlu0 %1420
        %1424 = vset.pattern.permute.xlu0 0
        %1425 = vperm.xlu0 %1424, %v1417
        %v1426 = vpop.permute.xlu0 %1425
        %vm1428 = vcmask 523264
        %v1430 = vsel %vm1428, %v1414, 0
        %v1433 = vsel %vm1428, %v1415, 0
        %1435 = vmatprep.subr.mxu0 0.0
        %1436 = vmatpush1.msra.mxu0 %v685
        %1437 = vmatprep.subr.mxu0 0.0
        %1438 = vmatpush1.msra.mxu0 %v789
        %1439 = vmatprep.subr.mxu0 0.0
        %1440 = vmatpush1.msra.mxu0 %v893
        %1441 = vmatprep.subr.mxu0 0.0
        %1442 = vmatpush1.msra.mxu0 %v997
        %1443 = vmatprep.subr.mxu0 0.0
        %1444 = vmatpush1.msra.mxu0 %v1101
        %1445 = vmatprep.subr.mxu0 0.0
        %1446 = vmatpush1.msra.mxu0 %v1205
        %1447 = vmatprep.subr.mxu0 0.0
        %1448 = vmatpush1.msra.mxu0 %v1309
        %1449 = vmatprep.subr.mxu0 0.0
        %1450 = vmatpush1.msra.mxu0 %v1413
        %1451 = vmatprep.subr.mxu0 0.0
        %1452 = vmatpush1.msra.mxu0 0.0
        %1453 = vmatprep.subr.mxu0 0.0
        %1454 = vmatpush1.msra.mxu0 0.0
        %1455 = vmatprep.subr.mxu0 0.0
        %1456 = vmatpush1.msra.mxu0 0.0
        %1457 = vmatprep.subr.mxu0 0.0
        %1458 = vmatpush1.msra.mxu0 0.0
        %1459 = vmatprep.subr.mxu0 0.0
        %1460 = vmatpush1.msra.mxu0 0.0
        %1461 = vmatprep.subr.mxu0 0.0
        %1462 = vmatpush1.msra.mxu0 0.0
        %1463 = vmatprep.subr.mxu0 0.0
        %1464 = vmatpush1.msra.mxu0 0.0
        %1465 = vmatprep.subr.mxu0 0.0
        %1466 = vmatpush1.msra.mxu0 0.0
        %1467 = vmatprep.subr.mxu0 0.0
        %1468 = vmatpush1.msra.mxu0 0.0
        %1469 = vmatprep.subr.mxu0 0.0
        %1470 = vmatpush1.msra.mxu0 0.0
        %1471 = vmatprep.subr.mxu0 0.0
        %1472 = vmatpush1.msra.mxu0 0.0
        %1473 = vmatprep.subr.mxu0 0.0
        %1474 = vmatpush1.msra.mxu0 0.0
        %1475 = vmatprep.subr.mxu0 0.0
        %1476 = vmatpush1.msra.mxu0 0.0
        %1477 = vmatprep.subr.mxu0 0.0
        %1478 = vmatpush1.msra.mxu0 0.0
        %1479 = vmatprep.subr.mxu0 0.0
        %1480 = vmatpush1.msra.mxu0 0.0
        %1481 = vmatprep.subr.mxu0 0.0
        %1482 = vmatpush1.msra.mxu0 0.0
        %1483 = vmatprep.subr.mxu0 0.0
        %1484 = vmatpush1.msra.mxu0 0.0
        %1485 = vmatprep.subr.mxu0 0.0
        %1486 = vmatpush1.msra.mxu0 0.0
        %1487 = vmatprep.subr.mxu0 0.0
        %1488 = vmatpush1.msra.mxu0 0.0
        %1489 = vmatprep.subr.mxu0 0.0
        %1490 = vmatpush1.msra.mxu0 0.0
        %1491 = vmatprep.subr.mxu0 0.0
        %1492 = vmatpush1.msra.mxu0 0.0
        %1493 = vmatprep.subr.mxu0 0.0
        %1494 = vmatpush1.msra.mxu0 0.0
        %1495 = vmatprep.subr.mxu0 0.0
        %1496 = vmatpush1.msra.mxu0 0.0
        %1497 = vmatprep.subr.mxu0 0.0
        %1498 = vmatpush1.msra.mxu0 0.0
        %1499 = vmatprep.mubr.f32.mxu0 0.0
        %1500 = vmatmul.mubr.f32.gmra.mrb[0].mxu0 %v1430
        %v1501 = vpop.f32.mrb[0].mxu0
        %v1502 = vadd.f32 %v1421, %v1501
        %v1503 = vpop.f32.mrb[0].mxu0
        %1504 = vmatprep.mubr.f32.mxu0 0.0
        %1505 = vmatmul.mubr.f32.gmra.mrb[0].mxu0 %v1433
        %v1506 = vpop.f32.mrb[0].mxu0
        %v1507 = vadd.f32 %v1426, %v1506
        %v1508 = vpop.f32.mrb[0].mxu0
        %1509 = vdwg.mxu0
        %v1510 = vand.u32 2147483647, %v1502
        %vm1511 = vcmp.le.f32.partialorder %v1510, 0.7853982
        %vm1512 = vcmp.lt.s32.totalorder %v1502, 0
        %v1513 = vand.u32 %v1502, 2139095040
        %v1514 = vshrl.u32 %v1513, 23
        %v1515 = vsub.s32 %v1514, 127
        %v1516 = vand.u32 2147483647, %v1502
        %v1517 = vand.u32 %v1516, 8388607
        %v1518 = vor.u32 %v1517, 8388608
        %v1519 = vsub.s32 0, %v1518
        %v1520 = vadd.s32 %v1515, 1
        %vm1521 = vcmp.gt.s32.totalorder %v1520, 0
        %v1522 = vsel %vm1521, %v1520, 0
        %v1523 = vshrl.u32 %v1522, 5
        %v1524 = vand.u32 %v1522, 31
        %v1525 = vsub.s32 32, %v1524
        %v1526 = vshrl.u32 683565275, %v1525
        %v1527 = vshll.u32 683565275, %v1524
        %v1528 = vshrl.u32 2475754826, %v1525
        %v1529 = vor.u32 %v1527, %v1528
        %v1530 = vshll.u32 2475754826, %v1524
        %v1531 = vshrl.u32 2131351028, %v1525
        %v1532 = vor.u32 %v1530, %v1531
        %v1533 = vshll.u32 2131351028, %v1524
        %v1534 = vshrl.u32 2102212464, %v1525
        %v1535 = vor.u32 %v1533, %v1534
        %v1536 = vshll.u32 2102212464, %v1524
        %v1537 = vshrl.u32 920167782, %v1525
        %v1538 = vor.u32 %v1536, %v1537
        %v1539 = vshll.u32 920167782, %v1524
        %v1540 = vshrl.u32 1326507024, %v1525
        %v1541 = vor.u32 %v1539, %v1540
        %vm1542 = vcmp.lt.s32.totalorder %v1523, 1
        %vm1543 = vcmp.lt.s32.totalorder %v1523, 2
        %vm1544 = vcmp.lt.s32.totalorder %v1523, 3
        %vm1545 = vcmp.lt.s32.totalorder %v1523, 4
        %v1546 = vsel %vm1542, %v1526, %v1529
        %v1547 = vsel %vm1545, %v1535, 2102212464
        %v1548 = vsel %vm1544, %v1532, %v1547
        %v1549 = vsel %vm1543, %v1546, %v1548
        %v1550 = vsel %vm1542, %v1529, %v1532
        %v1551 = vsel %vm1545, %v1538, 920167782
        %v1552 = vsel %vm1544, %v1535, %v1551
        %v1553 = vsel %vm1543, %v1550, %v1552
        %v1554 = vsel %vm1542, %v1532, %v1535
        %v1555 = vsel %vm1545, %v1541, 1326507024
        %v1556 = vsel %vm1544, %v1538, %v1555
        %v1557 = vsel %vm1543, %v1554, %v1556
        %v1558 = vshll.u32 %v1518, 8
        %v1559 = vmul.u32.u64.compose %v1558, %v1557
        %v1560 = vextract.low.u32 %v1559
        %v1561 = vextract.high.u32 %v1559
        %v1562 = vmul.u32.u64.compose %v1558, %v1553
        %v1563 = vextract.low.u32 %v1562
        %v1564 = vextract.high.u32 %v1562
        %v1565 = vmul.u32 %v1558, %v1549
        %v1566 = vadd.s32 %v1561, %v1563
        %vm1567 = vc.u32 %v1561, %v1563
        %v1568 = vadd.s32 %v1564, 1
        %v1569 = vsel %vm1567, %v1568, %v1564
        %v1570 = vadd.s32 %v1565, %v1569
        %v1571 = vadd.s32 %v1570, 536870912
        %v1572 = vshrl.u32 %v1571, 30
        %v1573 = vshll.u32 %v1572, 30
        %v1574 = vsub.s32 %v1570, %v1573
        %vm1575 = vcmp.lt.s32.totalorder %v1574, 0
        %v1576 = vsub.s32 0, %v1574
        %v1577 = vsel %vm1575, %v1576, %v1574
        %v1578 = vclz %v1577
        %v1579 = vsub.s32 %v1578, 2
        %vm1580 = vcmp.gt.s32.totalorder 0, %v1579
        %v1581 = vsel %vm1580, 0, %v1579
        %v1582 = vsub.s32 32, %v1581
        %v1583 = vshll.u32 %v1574, %v1581
        %v1584 = vshrl.u32 %v1566, %v1582
        %v1585 = vor.u32 %v1583, %v1584
        %v1586 = vsub.s32 4294967266, %v1581
        %v1587 = vadd.s32 %v1586, 127
        %v1588 = vshll.u32 %v1587, 23
        %v1589 = vor.u32 4788187, %v1588
        %v1590 = vand.u32 2147483647, %v1589
        %v1592 = vcvt.s32.f32 %v1585
        %v1593 = vmul.f32 %v1592, %v1590
        %v1594 = vxor.u32 %v1593, 2147483648
        %v1595 = vsel %vm1512, %v1594, %v1593
        %v1596 = vsub.s32 4, %v1572
        %v1597 = vsel %vm1512, %v1596, %v1572
        %v1598 = vsel %vm1511, %v1502, %v1595
        %v1599 = vsel %vm1511, 0, %v1597
        %v1600 = vcosq.f32.pop %v1598
        %v1601 = vsinq.f32.pop %v1598
        %vm1602 = vweird.f32 %v1502
        %v1603 = vadd.s32 %v1599, 3
        %v1604 = vand.u32 %v1603, 3
        %vm1605 = vcmp.lt.s32.totalorder %v1604, 2
        %vm1606 = vcmp.eq.s32.totalorder %v1604, 0
        %v1607 = vxor.u32 %v1601, 2147483648
        %v1608 = vsel %vm1606, %v1600, %v1607
        %vm1609 = vcmp.eq.s32.totalorder %v1604, 2
        %v1610 = vxor.u32 %v1600, 2147483648
        %v1611 = vsel %vm1609, %v1610, %v1601
        %v1612 = vsel %vm1605, %v1608, %v1611
        %v1613 = vsel %vm1602, nan, %v1612
        %v1614 = vand.u32 2147483647, %v1507
        %vm1615 = vcmp.le.f32.partialorder %v1614, 0.7853982
        %vm1616 = vcmp.lt.s32.totalorder %v1507, 0
        %v1617 = vand.u32 %v1507, 2139095040
        %v1618 = vshrl.u32 %v1617, 23
        %v1619 = vsub.s32 %v1618, 127
        %v1620 = vand.u32 2147483647, %v1507
        %v1621 = vand.u32 %v1620, 8388607
        %v1622 = vor.u32 %v1621, 8388608
        %v1623 = vsub.s32 0, %v1622
        %v1624 = vadd.s32 %v1619, 1
        %vm1625 = vcmp.gt.s32.totalorder %v1624, 0
        %v1626 = vsel %vm1625, %v1624, 0
        %v1627 = vshrl.u32 %v1626, 5
        %v1628 = vand.u32 %v1626, 31
        %v1629 = vsub.s32 32, %v1628
        %v1630 = vshrl.u32 683565275, %v1629
        %v1631 = vshll.u32 683565275, %v1628
        %v1632 = vshrl.u32 2475754826, %v1629
        %v1633 = vor.u32 %v1631, %v1632
        %v1634 = vshll.u32 2475754826, %v1628
        %v1635 = vshrl.u32 2131351028, %v1629
        %v1636 = vor.u32 %v1634, %v1635
        %v1637 = vshll.u32 2131351028, %v1628
        %v1638 = vshrl.u32 2102212464, %v1629
        %v1639 = vor.u32 %v1637, %v1638
        %v1640 = vshll.u32 2102212464, %v1628
        %v1641 = vshrl.u32 920167782, %v1629
        %v1642 = vor.u32 %v1640, %v1641
        %v1643 = vshll.u32 920167782, %v1628
        %v1644 = vshrl.u32 1326507024, %v1629
        %v1645 = vor.u32 %v1643, %v1644
        %vm1646 = vcmp.lt.s32.totalorder %v1627, 1
        %vm1647 = vcmp.lt.s32.totalorder %v1627, 2
        %vm1648 = vcmp.lt.s32.totalorder %v1627, 3
        %vm1649 = vcmp.lt.s32.totalorder %v1627, 4
        %v1650 = vsel %vm1646, %v1630, %v1633
        %v1651 = vsel %vm1649, %v1639, 2102212464
        %v1652 = vsel %vm1648, %v1636, %v1651
        %v1653 = vsel %vm1647, %v1650, %v1652
        %v1654 = vsel %vm1646, %v1633, %v1636
        %v1655 = vsel %vm1649, %v1642, 920167782
        %v1656 = vsel %vm1648, %v1639, %v1655
        %v1657 = vsel %vm1647, %v1654, %v1656
        %v1658 = vsel %vm1646, %v1636, %v1639
        %v1659 = vsel %vm1649, %v1645, 1326507024
        %v1660 = vsel %vm1648, %v1642, %v1659
        %v1661 = vsel %vm1647, %v1658, %v1660
        %v1662 = vshll.u32 %v1622, 8
        %v1663 = vmul.u32.u64.compose %v1662, %v1661
        %v1664 = vextract.low.u32 %v1663
        %v1665 = vextract.high.u32 %v1663
        %v1666 = vmul.u32.u64.compose %v1662, %v1657
        %v1667 = vextract.low.u32 %v1666
        %v1668 = vextract.high.u32 %v1666
        %v1669 = vmul.u32 %v1662, %v1653
        %v1670 = vadd.s32 %v1665, %v1667
        %vm1671 = vc.u32 %v1665, %v1667
        %v1672 = vadd.s32 %v1668, 1
        %v1673 = vsel %vm1671, %v1672, %v1668
        %v1674 = vadd.s32 %v1669, %v1673
        %v1675 = vadd.s32 %v1674, 536870912
        %v1676 = vshrl.u32 %v1675, 30
        %v1677 = vshll.u32 %v1676, 30
        %v1678 = vsub.s32 %v1674, %v1677
        %vm1679 = vcmp.lt.s32.totalorder %v1678, 0
        %v1680 = vsub.s32 0, %v1678
        %v1681 = vsel %vm1679, %v1680, %v1678
        %v1682 = vclz %v1681
        %v1683 = vsub.s32 %v1682, 2
        %vm1684 = vcmp.gt.s32.totalorder 0, %v1683
        %v1685 = vsel %vm1684, 0, %v1683
        %v1686 = vsub.s32 32, %v1685
        %v1687 = vshll.u32 %v1678, %v1685
        %v1688 = vshrl.u32 %v1670, %v1686
        %v1689 = vor.u32 %v1687, %v1688
        %v1690 = vsub.s32 4294967266, %v1685
        %v1691 = vadd.s32 %v1690, 127
        %v1692 = vshll.u32 %v1691, 23
        %v1693 = vor.u32 4788187, %v1692
        %v1694 = vand.u32 2147483647, %v1693
        %v1696 = vcvt.s32.f32 %v1689
        %v1697 = vmul.f32 %v1696, %v1694
        %v1698 = vxor.u32 %v1697, 2147483648
        %v1699 = vsel %vm1616, %v1698, %v1697
        %v1700 = vsub.s32 4, %v1676
        %v1701 = vsel %vm1616, %v1700, %v1676
        %v1702 = vsel %vm1615, %v1507, %v1699
        %v1703 = vsel %vm1615, 0, %v1701
        %v1704 = vcosq.f32.pop %v1702
        %v1705 = vsinq.f32.pop %v1702
        %vm1706 = vweird.f32 %v1507
        %v1707 = vadd.s32 %v1703, 3
        %v1708 = vand.u32 %v1707, 3
        %vm1709 = vcmp.lt.s32.totalorder %v1708, 2
        %vm1710 = vcmp.eq.s32.totalorder %v1708, 0
        %v1711 = vxor.u32 %v1705, 2147483648
        %v1712 = vsel %vm1710, %v1704, %v1711
        %vm1713 = vcmp.eq.s32.totalorder %v1708, 2
        %v1714 = vxor.u32 %v1704, 2147483648
        %v1715 = vsel %vm1713, %v1714, %v1705
        %v1716 = vsel %vm1709, %v1712, %v1715
        %v1717 = vsel %vm1706, nan, %v1716
        %v1718 = vld [vmem:[%s5] sm:$0xff]
        %v1719 = vld [vmem:[%s6] sm:$0xff]
        %1721 = vset.pattern.permute.xlu0 0
        %1722 = vperm.xlu0 %1721, %v1719
        %v1723 = vpop.permute.xlu0 %1722
        %vm1725 = vcmask 130048
        %v1727 = vsel %vm1725, %v1718, 0
        %1729 = vmatprep.subr.mxu0 0.0
        %1730 = vmatpush1.msra.mxu0 %v1613
        %1731 = vmatprep.subr.mxu0 0.0
        %1732 = vmatpush1.msra.mxu0 %v1717
        %1733 = vmatprep.subr.mxu0 0.0
        %1734 = vmatpush1.msra.mxu0 0.0
        %1735 = vmatprep.subr.mxu0 0.0
        %1736 = vmatpush1.msra.mxu0 0.0
        %1737 = vmatprep.subr.mxu0 0.0
        %1738 = vmatpush1.msra.mxu0 0.0
        %1739 = vmatprep.subr.mxu0 0.0
        %1740 = vmatpush1.msra.mxu0 0.0
        %1741 = vmatprep.subr.mxu0 0.0
        %1742 = vmatpush1.msra.mxu0 0.0
        %1743 = vmatprep.subr.mxu0 0.0
        %1744 = vmatpush1.msra.mxu0 0.0
        %1745 = vmatprep.subr.mxu0 0.0
        %1746 = vmatpush1.msra.mxu0 0.0
        %1747 = vmatprep.subr.mxu0 0.0
        %1748 = vmatpush1.msra.mxu0 0.0
        %1749 = vmatprep.subr.mxu0 0.0
        %1750 = vmatpush1.msra.mxu0 0.0
        %1751 = vmatprep.subr.mxu0 0.0
        %1752 = vmatpush1.msra.mxu0 0.0
        %1753 = vmatprep.subr.mxu0 0.0
        %1754 = vmatpush1.msra.mxu0 0.0
        %1755 = vmatprep.subr.mxu0 0.0
        %1756 = vmatpush1.msra.mxu0 0.0
        %1757 = vmatprep.subr.mxu0 0.0
        %1758 = vmatpush1.msra.mxu0 0.0
        %1759 = vmatprep.subr.mxu0 0.0
        %1760 = vmatpush1.msra.mxu0 0.0
        %1761 = vmatprep.subr.mxu0 0.0
        %1762 = vmatpush1.msra.mxu0 0.0
        %1763 = vmatprep.subr.mxu0 0.0
        %1764 = vmatpush1.msra.mxu0 0.0
        %1765 = vmatprep.subr.mxu0 0.0
        %1766 = vmatpush1.msra.mxu0 0.0
        %1767 = vmatprep.subr.mxu0 0.0
        %1768 = vmatpush1.msra.mxu0 0.0
        %1769 = vmatprep.subr.mxu0 0.0
        %1770 = vmatpush1.msra.mxu0 0.0
        %1771 = vmatprep.subr.mxu0 0.0
        %1772 = vmatpush1.msra.mxu0 0.0
        %1773 = vmatprep.subr.mxu0 0.0
        %1774 = vmatpush1.msra.mxu0 0.0
        %1775 = vmatprep.subr.mxu0 0.0
        %1776 = vmatpush1.msra.mxu0 0.0
        %1777 = vmatprep.subr.mxu0 0.0
        %1778 = vmatpush1.msra.mxu0 0.0
        %1779 = vmatprep.subr.mxu0 0.0
        %1780 = vmatpush1.msra.mxu0 0.0
        %1781 = vmatprep.subr.mxu0 0.0
        %1782 = vmatpush1.msra.mxu0 0.0
        %1783 = vmatprep.subr.mxu0 0.0
        %1784 = vmatpush1.msra.mxu0 0.0
        %1785 = vmatprep.subr.mxu0 0.0
        %1786 = vmatpush1.msra.mxu0 0.0
        %1787 = vmatprep.subr.mxu0 0.0
        %1788 = vmatpush1.msra.mxu0 0.0
        %1789 = vmatprep.subr.mxu0 0.0
        %1790 = vmatpush1.msra.mxu0 0.0
        %1791 = vmatprep.subr.mxu0 0.0
        %1792 = vmatpush1.msra.mxu0 0.0
        %1793 = vmatprep.mubr.f32.mxu0 0.0
        %1794 = vmatmul.mubr.f32.gmra.mrb[0].mxu0 %v1727
        %v1795 = vpop.f32.mrb[0].mxu0
        %v1796 = vadd.f32 %v1723, %v1795
        %v1797 = vpop.f32.mrb[0].mxu0
        %1798 = vdwg.mxu0
        %v1799 = vand.u32 2147483647, %v1796
        %vm1800 = vcmp.le.f32.partialorder %v1799, 0.7853982
        %vm1801 = vcmp.lt.s32.totalorder %v1796, 0
        %v1802 = vand.u32 %v1796, 2139095040
        %v1803 = vshrl.u32 %v1802, 23
        %v1804 = vsub.s32 %v1803, 127
        %v1805 = vand.u32 2147483647, %v1796
        %v1806 = vand.u32 %v1805, 8388607
        %v1807 = vor.u32 %v1806, 8388608
        %v1808 = vsub.s32 0, %v1807
        %v1809 = vadd.s32 %v1804, 1
        %vm1810 = vcmp.gt.s32.totalorder %v1809, 0
        %v1811 = vsel %vm1810, %v1809, 0
        %v1812 = vshrl.u32 %v1811, 5
        %v1813 = vand.u32 %v1811, 31
        %v1814 = vsub.s32 32, %v1813
        %v1815 = vshrl.u32 683565275, %v1814
        %v1816 = vshll.u32 683565275, %v1813
        %v1817 = vshrl.u32 2475754826, %v1814
        %v1818 = vor.u32 %v1816, %v1817
        %v1819 = vshll.u32 2475754826, %v1813
        %v1820 = vshrl.u32 2131351028, %v1814
        %v1821 = vor.u32 %v1819, %v1820
        %v1822 = vshll.u32 2131351028, %v1813
        %v1823 = vshrl.u32 2102212464, %v1814
        %v1824 = vor.u32 %v1822, %v1823
        %v1825 = vshll.u32 2102212464, %v1813
        %v1826 = vshrl.u32 920167782, %v1814
        %v1827 = vor.u32 %v1825, %v1826
        %v1828 = vshll.u32 920167782, %v1813
        %v1829 = vshrl.u32 1326507024, %v1814
        %v1830 = vor.u32 %v1828, %v1829
        %vm1831 = vcmp.lt.s32.totalorder %v1812, 1
        %vm1832 = vcmp.lt.s32.totalorder %v1812, 2
        %vm1833 = vcmp.lt.s32.totalorder %v1812, 3
        %vm1834 = vcmp.lt.s32.totalorder %v1812, 4
        %v1835 = vsel %vm1831, %v1815, %v1818
        %v1836 = vsel %vm1834, %v1824, 2102212464
        %v1837 = vsel %vm1833, %v1821, %v1836
        %v1838 = vsel %vm1832, %v1835, %v1837
        %v1839 = vsel %vm1831, %v1818, %v1821
        %v1840 = vsel %vm1834, %v1827, 920167782
        %v1841 = vsel %vm1833, %v1824, %v1840
        %v1842 = vsel %vm1832, %v1839, %v1841
        %v1843 = vsel %vm1831, %v1821, %v1824
        %v1844 = vsel %vm1834, %v1830, 1326507024
        %v1845 = vsel %vm1833, %v1827, %v1844
        %v1846 = vsel %vm1832, %v1843, %v1845
        %v1847 = vshll.u32 %v1807, 8
        %v1848 = vmul.u32.u64.compose %v1847, %v1846
        %v1849 = vextract.low.u32 %v1848
        %v1850 = vextract.high.u32 %v1848
        %v1851 = vmul.u32.u64.compose %v1847, %v1842
        %v1852 = vextract.low.u32 %v1851
        %v1853 = vextract.high.u32 %v1851
        %v1854 = vmul.u32 %v1847, %v1838
        %v1855 = vadd.s32 %v1850, %v1852
        %vm1856 = vc.u32 %v1850, %v1852
        %v1857 = vadd.s32 %v1853, 1
        %v1858 = vsel %vm1856, %v1857, %v1853
        %v1859 = vadd.s32 %v1854, %v1858
        %v1860 = vadd.s32 %v1859, 536870912
        %v1861 = vshrl.u32 %v1860, 30
        %v1862 = vshll.u32 %v1861, 30
        %v1863 = vsub.s32 %v1859, %v1862
        %vm1864 = vcmp.lt.s32.totalorder %v1863, 0
        %v1865 = vsub.s32 0, %v1863
        %v1866 = vsel %vm1864, %v1865, %v1863
        %v1867 = vclz %v1866
        %v1868 = vsub.s32 %v1867, 2
        %vm1869 = vcmp.gt.s32.totalorder 0, %v1868
        %v1870 = vsel %vm1869, 0, %v1868
        %v1871 = vsub.s32 32, %v1870
        %v1872 = vshll.u32 %v1863, %v1870
        %v1873 = vshrl.u32 %v1855, %v1871
        %v1874 = vor.u32 %v1872, %v1873
        %v1875 = vsub.s32 4294967266, %v1870
        %v1876 = vadd.s32 %v1875, 127
        %v1877 = vshll.u32 %v1876, 23
        %v1878 = vor.u32 4788187, %v1877
        %v1879 = vand.u32 2147483647, %v1878
        %v1881 = vcvt.s32.f32 %v1874
        %v1882 = vmul.f32 %v1881, %v1879
        %v1883 = vxor.u32 %v1882, 2147483648
        %v1884 = vsel %vm1801, %v1883, %v1882
        %v1885 = vsub.s32 4, %v1861
        %v1886 = vsel %vm1801, %v1885, %v1861
        %v1887 = vsel %vm1800, %v1796, %v1884
        %v1888 = vsel %vm1800, 0, %v1886
        %v1889 = vcosq.f32.pop %v1887
        %v1890 = vsinq.f32.pop %v1887
        %vm1891 = vweird.f32 %v1796
        %v1892 = vadd.s32 %v1888, 3
        %v1893 = vand.u32 %v1892, 3
        %vm1894 = vcmp.lt.s32.totalorder %v1893, 2
        %vm1895 = vcmp.eq.s32.totalorder %v1893, 0
        %v1896 = vxor.u32 %v1890, 2147483648
        %v1897 = vsel %vm1895, %v1889, %v1896
        %vm1898 = vcmp.eq.s32.totalorder %v1893, 2
        %v1899 = vxor.u32 %v1889, 2147483648
        %v1900 = vsel %vm1898, %v1899, %v1890
        %v1901 = vsel %vm1894, %v1897, %v1900
        %v1902 = vsel %vm1891, nan, %v1901
        %1903 = vst [vmem:[%s341] sm:$0xff] %v1902
        %v1904 = vrot.slane %v1902, 4
        %v1905 = vmax.f32 %v1902, %v1904
        %v1906 = vrot.slane %v1905, 2
        %v1907 = vmax.f32 %v1905, %v1906
        %v1908 = vrot.slane %v1907, 1
        %v1909 = vmax.f32 %v1907, %v1908
        %1910 = vst [vmem:[%s347] sm:$0x1] %v1909
        %s1911 = sand.u32 %s207, 1
        %s1912 = scalar_lea.sflag [#allocation3], %s1911
        %s1913 = sand.u32 %s207, 1
        %s1914 = smul.addr %s1913, 8
        %s1915 = scalar_lea.vmem [#allocation2], %s1914
        %s1916 = sand.u32 %s235, 1
        %s1917 = scalar_lea.sflag [#allocation5], %s1916
        %s1918 = sand.u32 %s235, 1
        %s1919 = scalar_lea.vmem [#allocation4], %s1918
        // Predicated region
        $region49: #{generator_forward.1} parent=47 // pred_check
          %p1920 = pneg %p217
        $region50: #{generator_forward.1} parent=47 // pred_check_branch
          %1922 = sbr.rel (%p1920) target = $region52
        $region51: #{generator_forward.1} parent=47 // pred_region
          %s1924 = ssub.s32 128, 128
          %1925 = vsyncadd %s1912, %s1924
          %s1926 = smul.addr %s30, 2
          %s1927 = sadd.s32 %s31, %s1926
          %s1928 = smul.addr %s1927, 128
          %s1929 = scalar_lea.hbm %s7, %s1928
          %s1931 = sshll.u32 %s1915, 4
          %s1932 = int_to_ptr.vmem [resolvable:$true] %s1931
          %1934 = dma.vmem_to_hbm [thread:$0]  %s1932, 128, %s1929, %s1912
        $region52: #{generator_forward.1} parent=47 // pred_fallthru
          _
        // Predicated region
        $region53: #{generator_forward.1} parent=47 // pred_check
          %p1935 = pneg %p245
        $region54: #{generator_forward.1} parent=47 // pred_check_branch
          %1937 = sbr.rel (%p1935) target = $region56
        $region55: #{generator_forward.1} parent=47 // pred_region
          %s1939 = ssub.s32 16, 16
          %1940 = vsyncadd %s1917, %s1939
          %s1941 = smul.addr %s30, 2
          %s1942 = sadd.s32 %s31, %s1941
          %s1943 = smul.addr %s1942, 16
          %s1944 = scalar_lea.hbm %s8, %s1943
          %s1946 = sshll.u32 %s1919, 4
          %s1947 = int_to_ptr.vmem [resolvable:$true] %s1946
          %1949 = dma.vmem_to_hbm [thread:$0]  %s1947, 16, %s1944, %s1917
        $region56: #{generator_forward.1} parent=47 // pred_fallthru
          _
      $region48: #{generator_forward.1} parent=5 // pred_fallthru
        _
      %p1950 = scmp.le.s32.totalorder 2, %s21
      // Predicated region
      $region57: #{generator_forward.1} parent=5 // pred_check
        %p1951 = pneg %p1950
      $region58: #{generator_forward.1} parent=5 // pred_check_branch
        %1953 = sbr.rel (%p1951) target = $region60
      $region59: #{generator_forward.1} parent=5 // pred_region
        %s1954 = ssub.s32 %s21, 2
        // Predicated region
        $region61: #{generator_forward.1} parent=59 // pred_check
          %p1955 = pneg %p223
        $region62: #{generator_forward.1} parent=59 // pred_check_branch
          %1957 = sbr.rel (%p1955) target = $region64
        $region63: #{generator_forward.1} parent=59 // pred_region
          %s1958 = sand.u32 %s208, 1
          %s1959 = scalar_lea.sflag [#allocation3], %s1958
          %s1960 = sand.u32 %s208, 1
          %s1961 = smul.addr %s1960, 8
          %s1962 = scalar_lea.vmem [#allocation2], %s1961
          %1963 = dma.done %s1959, 128
        $region64: #{generator_forward.1} parent=59 // pred_fallthru
          _
        // Predicated region
        $region65: #{generator_forward.1} parent=59 // pred_check
          %p1964 = pneg %p251
        $region66: #{generator_forward.1} parent=59 // pred_check_branch
          %1966 = sbr.rel (%p1964) target = $region68
        $region67: #{generator_forward.1} parent=59 // pred_region
          %s1967 = sand.u32 %s236, 1
          %s1968 = scalar_lea.sflag [#allocation5], %s1967
          %s1969 = sand.u32 %s236, 1
          %s1970 = scalar_lea.vmem [#allocation4], %s1969
          %1971 = dma.done %s1968, 16
        $region68: #{generator_forward.1} parent=59 // pred_fallthru
          _
      $region60: #{generator_forward.1} parent=5 // pred_fallthru
        _
    $region6: #{generator_forward.1} parent=1 // loop_footer
      %s25 = sadd.s32 1, %s21
    $region7: #{generator_forward.1} parent=1 // loop_footer_branch
      %20 = sbr.rel target = $region3
    $region8: #{generator_forward.1} parent=1 // loop_exit
      _
    %1972 = vsyncpa [#allocation3], 1
    %s1973 = scalar_lea.sflag [#allocation3], 1
    %1974 = vsyncpa %s1973, 1
    %1975 = vsyncpa [#allocation5], 1
    %s1976 = scalar_lea.sflag [#allocation5], 1
    %1977 = vsyncpa %s1976, 1

</llo_original>
